<compile_context>
chip_gen: v5e
topology: v5e:2x2
jax: 0.10.0
libtpu: 0.0.40
codegen_flags: <defaults>
</compile_context>

<pallas_src>
import functools

import jax
import jax.numpy as jnp
from jax import lax
from jax.experimental import pallas as pl
from jax.experimental.pallas import tpu as pltpu


def _round_up(x, m):
    return (x + m - 1) // m * m


def _physical_vmem_bytes():
    try:
        return int(pltpu.get_tpu_info().vmem_capacity_bytes)
    except Exception:
        return 64 * 1024 * 1024          # conservative (v7x per-core VMEM)


def _vmem_need_bytes(tc, bt, ep, gp, hid, op):
    gx = 2 * tc * bt * (3 * gp) * 4                       # double-buffered f32 gx scratch
    hbuf = bt * max(2 * hid, 128) * 4                     # carried hidden state
    emb = 2 * 2 * tc * bt * ep * 2                        # 2 streams x 2 pipeline bufs, bf16
    weights = 2 * 2 * (ep * 3 * gp + 2 * hid * 3 * gp + 2 * hid * op)   # bf16, x2 buffers
    out = 2 * bt * op * 4
    misc = 1 << 20                                        # biases + internal scratch headroom
    return gx + hbuf + emb + weights + out + misc


def _bigru_kernel(emb_f_ref, emb_b_ref,                   # (1, TC*BT, Ep) bf16 chunks
                  wih_f_ref, wih_b_ref, bih_ref,
                  whh_ref, bhhn_ref, wfc_ref, bfc_ref,
                  out_ref,                                # (BT, OP) f32
                  h_ref, gx_ref,                          # VMEM scratch
                  *, hidden_dim, gate_pad, t_chunk, batch_tile,
                  seq_len, n_chunks, unroll):
    H = hidden_dim
    GP = gate_pad
    TC = t_chunk
    BT = batch_tile
    NC = n_chunks
    rows = TC * BT                                        # rows per gx buffer slot
    c = pl.program_id(1)

    @pl.when(c == 0)
    def _init():
        h_ref[...] = jnp.zeros_like(h_ref)                # h = [h_fwd | h_bwd] = 0

    # ---- hoisted input projection for chunk c (both directions accumulated
    #      into disjoint lane groups of ONE gx buffer), written to slot c & 1.
    #      Sits in the same grid step as the latency-bound recurrence below so
    #      its MXU work can hide in the recurrence's slack.
    @pl.when(c < NC)
    def _project():
        slot = c & 1
        off = pl.multiple_of(slot * rows, rows)
        ef = emb_f_ref[0]                                 # (rows, Ep) bf16
        eb = emb_b_ref[0]
        gx = jnp.dot(ef, wih_f_ref[...], preferred_element_type=jnp.float32)
        gx = gx + jnp.dot(eb, wih_b_ref[...], preferred_element_type=jnp.float32)
        gx_ref[pl.ds(off, rows), :] = gx + bih_ref[...]   # bias has bhh[r,z] folded in

    # ---- serial GRU recurrence over chunk c-1 (its projection is already in VMEM).
    @pl.when(c >= 1)
    def _recur():
        ck = c - 1
        slot = ck & 1
        base = pl.multiple_of(slot * rows, rows)
        whh = whh_ref[...]                                # (2H, 3GP) bf16, block-diagonal
        bhhn = bhhn_ref[...]                              # (1, 2H) f32, n-gate recurrent bias

        def step(s, h):
            row = pl.multiple_of(base + s * BT, BT)
            gx = gx_ref[pl.ds(row, BT), :]                # (BT, 3GP) f32
            gh = jnp.dot(h.astype(jnp.bfloat16), whh,
                         preferred_element_type=jnp.float32)
            r = jax.nn.sigmoid(gx[:, 0:2 * H] + gh[:, 0:2 * H])
            z = jax.nn.sigmoid(gx[:, GP:GP + 2 * H] + gh[:, GP:GP + 2 * H])
            n = jnp.tanh(gx[:, 2 * GP:2 * GP + 2 * H]
                         + r * (gh[:, 2 * GP:2 * GP + 2 * H] + bhhn))
            h_new = (1.0 - z) * n + z * h
            if TC * NC != seq_len:                        # static: only when T was padded
                valid = (ck * TC + s) < seq_len
                h_new = jnp.where(valid, h_new, h)
            return h_new

        h_ref[...] = lax.fori_loop(0, TC, step, h_ref[...], unroll=unroll)

    @pl.when(c == NC)
    def _finalize():
        # h is already [h_fwd_final | h_bwd_final] == cat(hidden[-2], hidden[-1])
        h = h_ref[...]
        logits = jnp.dot(h.astype(jnp.bfloat16), wfc_ref[...],
                         preferred_element_type=jnp.float32) + bfc_ref[...]
        out_ref[...] = logits.astype(out_ref.dtype)


def pack_params(params, hidden_dim):
    """Re-layout raw per-direction GRU/FC params into the lane-aligned,
    direction-fused, bf16 form the kernel consumes.  Pure JAX, done once."""
    H = hidden_dim
    E = params["wih_f"].shape[0]
    O = params["fc_w"].shape[1]
    GP = _round_up(2 * H, 128)               # per-gate lane-padded group
    Ep = _round_up(E, 128)
    OP = _round_up(O, 128)
    f32 = jnp.float32
    bf16 = jnp.bfloat16

    def spread_w(w, off):                    # (E, 3H) -> (Ep, 3GP)
        W = jnp.zeros((Ep, 3 * GP), f32)
        for g in range(3):                   # gate order (r, z, n)
            W = W.at[:E, g * GP + off:g * GP + off + H].set(w[:, g * H:(g + 1) * H])
        return W

    def spread_b(b, off):                    # (3H,) -> (1, 3GP)
        Bv = jnp.zeros((1, 3 * GP), f32)
        for g in range(3):
            Bv = Bv.at[0, g * GP + off:g * GP + off + H].set(b[g * H:(g + 1) * H])
        return Bv

    wih_f = spread_w(params["wih_f"], 0)     # fwd cols [0:H] of each gate group
    wih_b = spread_w(params["wih_b"], H)     # bwd cols [H:2H]

    # Combined projection bias: b_ih (both dirs) + folded r/z components of b_hh.
    bhh_f = params["bhh_f"].astype(f32)
    bhh_b = params["bhh_b"].astype(f32)
    fold_f = jnp.zeros((3 * H,), f32).at[:2 * H].set(bhh_f[:2 * H])
    fold_b = jnp.zeros((3 * H,), f32).at[:2 * H].set(bhh_b[:2 * H])
    bih = (spread_b(params["bih_f"], 0) + spread_b(params["bih_b"], H)
           + spread_b(fold_f, 0) + spread_b(fold_b, H))

    # n-gate recurrent bias stays inside r*(W_hn h + b_hn): [fwd | bwd] over 2H lanes.
    bhhn = jnp.concatenate([bhh_f[2 * H:], bhh_b[2 * H:]]).reshape(1, 2 * H)

    # Block-diagonal recurrent weights: one matmul serves both directions.
    whh = jnp.zeros((2 * H, 3 * GP), f32)
    for g in range(3):
        whh = whh.at[0:H, g * GP:g * GP + H].set(params["whh_f"][:, g * H:(g + 1) * H])
        whh = whh.at[H:2 * H, g * GP + H:g * GP + 2 * H].set(
            params["whh_b"][:, g * H:(g + 1) * H])

    wfc = jnp.zeros((2 * H, OP), f32).at[:, :O].set(params["fc_w"])
    bfc = jnp.zeros((1, OP), f32).at[0, :O].set(params["fc_b"])

    return dict(wih_f=wih_f.astype(bf16), wih_b=wih_b.astype(bf16), bih=bih,
                whh=whh.astype(bf16), bhhn=bhhn,
                wfc=wfc.astype(bf16), bfc=bfc,
                gate_pad=GP, e_pad=Ep, out_pad=OP)


def bigru_forward(text, params, *, hidden_dim):
    """text: (B, T) int32 token ids.  Returns logits (B, output_dim)."""
    H = hidden_dim
    B, T = text.shape
    E = params["embedding"].shape[1]
    O = params["fc_w"].shape[1]

    packed = pack_params(params, H)
    GP, Ep, OP = packed["gate_pad"], packed["e_pad"], packed["out_pad"]

    Bp = _round_up(B, 8)                          # sublane-pad the batch
    # Batch-tile axis for v7x's two TensorCores (harmless elsewhere).
    NBT = 2 if (Bp >= 16 and Bp % 16 == 0) else 1
    BT = Bp // NBT

    # --- per-generation time-chunk / VMEM sizing ----------------------------
    phys = _physical_vmem_bytes()
    budget = max(int(phys * 0.6), 8 * 1024 * 1024)
    tc_max = 1
    for tc in range(1, min(T, 64) + 1):
        if _vmem_need_bytes(tc, BT, Ep, GP, H, OP) <= budget:
            tc_max = tc
    NC = -(-T // tc_max)                          # number of time chunks
    TC = -(-T // NC)                              # balanced chunk size (<= tc_max)
    Tp = TC * NC                                  # padded sequence length
    unroll = max(1, min(TC, 8))
    need = _vmem_need_bytes(TC, BT, Ep, GP, H, OP)
    vmem_limit = int(min(phys * 0.9, max(need * 1.5, 32 * 1024 * 1024)))

    # --- glue: embedding gather (dropout == identity in eval), time-major layout,
    #     pre-reversed backward stream, padding (T->Tp, B->Bp, E->Ep), batch-tile
    #     regrouping and bf16 cast.
    emb = params["embedding"][text].astype(jnp.float32)       # (B, T, E)
    emb_tm = jnp.transpose(emb, (1, 0, 2))                    # (T, B, E)
    pad = ((0, Tp - T), (0, Bp - B), (0, Ep - E))
    emb_fwd = jnp.pad(emb_tm, pad)                            # padding at the END
    emb_bwd = jnp.pad(emb_tm[::-1], pad)                      # reversed valid part, pad at END

    def tile_stream(x):                                       # (Tp,Bp,Ep) -> (NBT, Tp*BT, Ep)
        x = x.reshape(Tp, NBT, BT, Ep)
        x = jnp.transpose(x, (1, 0, 2, 3))
        return x.reshape(NBT, Tp * BT, Ep).astype(jnp.bfloat16)

    emb_fwd = tile_stream(emb_fwd)
    emb_bwd = tile_stream(emb_bwd)

    kernel = functools.partial(
        _bigru_kernel, hidden_dim=H, gate_pad=GP, t_chunk=TC, batch_tile=BT,
        seq_len=T, n_chunks=NC, unroll=unroll)

    def const_spec(a):
        nd = a.ndim

        def imap(bt, c):
            return (0,) * nd

        return pl.BlockSpec(a.shape, imap)

    def emb_spec():
        def imap(bt, c):
            return (bt, jnp.minimum(c, NC - 1), 0)

        return pl.BlockSpec((1, TC * BT, Ep), imap)

    grid_spec = pltpu.PrefetchScalarGridSpec(
        num_scalar_prefetch=0,
        grid=(NBT, NC + 1),
        in_specs=[
            emb_spec(), emb_spec(),
            const_spec(packed["wih_f"]), const_spec(packed["wih_b"]),
            const_spec(packed["bih"]), const_spec(packed["whh"]),
            const_spec(packed["bhhn"]), const_spec(packed["wfc"]),
            const_spec(packed["bfc"]),
        ],
        out_specs=pl.BlockSpec((BT, OP), lambda bt, c: (bt, 0)),
        scratch_shapes=[
            pltpu.VMEM((BT, 2 * H), jnp.float32),            # carried [h_fwd | h_bwd]
            pltpu.VMEM((2 * TC * BT, 3 * GP), jnp.float32),  # double-buffered gx
        ],
    )

    out = pl.pallas_call(
        kernel,
        out_shape=jax.ShapeDtypeStruct((Bp, OP), jnp.float32),
        grid_spec=grid_spec,
        compiler_params=pltpu.CompilerParams(
            dimension_semantics=("parallel", "arbitrary"),
            vmem_limit_bytes=vmem_limit,
        ),
    )(emb_fwd, emb_bwd,
      packed["wih_f"], packed["wih_b"], packed["bih"],
      packed["whh"], packed["bhhn"], packed["wfc"], packed["bfc"])
    return out[:B, :O]


def bigru_reference(text, params, *, hidden_dim, mixed=False):
    """Pure-JAX reference with PyTorch nn.GRU semantics.  mixed=True mimics the
    kernel's bf16 matmul operands (f32 accumulation) for a tight comparison."""
    H = hidden_dim
    emb = params["embedding"][text].astype(jnp.float32)       # (B, T, E)
    B, T, _ = emb.shape

    def dot(a, b):
        if mixed:
            return jnp.dot(a.astype(jnp.bfloat16), b.astype(jnp.bfloat16),
                           preferred_element_type=jnp.float32)
        return jnp.dot(a, b)

    def cell(x_t, h, wih, whh, bih, bhh):
        gx = dot(x_t, wih) + bih
        gh = dot(h, whh) + bhh
        r = jax.nn.sigmoid(gx[:, :H] + gh[:, :H])
        z = jax.nn.sigmoid(gx[:, H:2 * H] + gh[:, H:2 * H])
        n = jnp.tanh(gx[:, 2 * H:] + r * gh[:, 2 * H:])
        return (1.0 - z) * n + z * h

    h_f = jnp.zeros((B, H), jnp.float32)
    h_b = jnp.zeros((B, H), jnp.float32)
    for t in range(T):
        h_f = cell(emb[:, t, :], h_f, params["wih_f"], params["whh_f"],
                   params["bih_f"], params["bhh_f"])
        h_b = cell(emb[:, T - 1 - t, :], h_b, params["wih_b"], params["whh_b"],
                   params["bih_b"], params["bhh_b"])
    hcat = jnp.concatenate([h_f, h_b], axis=1)
    return dot(hcat, params["fc_w"]) + params["fc_b"]


def init_params(key, vocab_size, embedding_dim, hidden_dim, output_dim, pad_idx):
    ks = jax.random.split(key, 12)
    H, E, O = hidden_dim, embedding_dim, output_dim
    gru_bound = 1.0 / jnp.sqrt(H)
    fc_bound = 1.0 / jnp.sqrt(2.0 * H)

    emb = jax.random.normal(ks[0], (vocab_size, E), jnp.float32)
    emb = emb.at[pad_idx].set(0.0)           # padding row zeroed in the pretrained matrix

    def u(k, shape, bound):
        return jax.random.uniform(k, shape, jnp.float32, -bound, bound)

    return {
        "embedding": emb,
        # per-direction GRU params, weights pre-transposed for x @ W, gate order (r, z, n)
        "wih_f": u(ks[1], (E, 3 * H), gru_bound),
        "whh_f": u(ks[2], (H, 3 * H), gru_bound),
        "bih_f": u(ks[3], (3 * H,), gru_bound),
        "bhh_f": u(ks[4], (3 * H,), gru_bound),
        "wih_b": u(ks[5], (E, 3 * H), gru_bound),
        "whh_b": u(ks[6], (H, 3 * H), gru_bound),
        "bih_b": u(ks[7], (3 * H,), gru_bound),
        "bhh_b": u(ks[8], (3 * H,), gru_bound),
        # fc
        "fc_w": u(ks[9], (2 * H, O), fc_bound),
        "fc_b": u(ks[10], (O,), fc_bound),
    }


if __name__ == "__main__":
    VOCAB, E, H, O, PAD = 50, 16, 32, 2, 0
    B, T = 2, 8

    key = jax.random.PRNGKey(0)
    k_par, k_txt = jax.random.split(key)
    params = init_params(k_par, VOCAB, E, H, O, PAD)
    text = jax.random.randint(k_txt, (B, T), 0, VOCAB, dtype=jnp.int32)

    out = bigru_forward(text, params, hidden_dim=H)
    out = jax.block_until_ready(out)
    assert out.shape == (B, O)

    ref_mixed = bigru_reference(text, params, hidden_dim=H, mixed=True)
    ref_f32 = bigru_reference(text, params, hidden_dim=H, mixed=False)
    assert jnp.allclose(out, ref_mixed, atol=2e-3, rtol=2e-3), (out, ref_mixed)
    assert jnp.allclose(out, ref_f32, atol=5e-2, rtol=5e-2), (out, ref_f32)

    print("KERNEL_OK")
</pallas_src>

<mosaic_0001>
module attributes {stable_mosaic.version = 11 : i64} {
  func.func @_bigru_kernel(%arg0: i32, %arg1: i32, %arg2: memref<1x64x128xbf16, #tpu.memory_space<vmem>>, %arg3: memref<1x64x128xbf16, #tpu.memory_space<vmem>>, %arg4: memref<128x384xbf16, #tpu.memory_space<vmem>>, %arg5: memref<128x384xbf16, #tpu.memory_space<vmem>>, %arg6: memref<1x384xf32, #tpu.memory_space<vmem>>, %arg7: memref<64x384xbf16, #tpu.memory_space<vmem>>, %arg8: memref<1x64xf32, #tpu.memory_space<vmem>>, %arg9: memref<64x128xbf16, #tpu.memory_space<vmem>>, %arg10: memref<1x128xf32, #tpu.memory_space<vmem>>, %arg11: memref<8x128xf32, #tpu.memory_space<vmem>>, %arg12: memref<8x64xf32, #tpu.memory_space<vmem>>, %arg13: memref<128x384xf32, #tpu.memory_space<vmem>>) attributes {dimension_semantics = [#tpu.dimension_semantics<parallel>, #tpu.dimension_semantics<arbitrary>], iteration_bounds = array<i64: 1, 2>, scalar_prefetch = 0 : i64, scratch_operands = 2 : i64, tpu.core_type = #tpu.core_type<tc>, window_params = [{transform_indices = @transform_0, window_bounds = array<i64: 1, 64, 128>}, {transform_indices = @transform_1, window_bounds = array<i64: 1, 64, 128>}, {pipeline_mode = #tpu.pipeline_mode<synchronous>, transform_indices = @transform_2, window_bounds = array<i64: 128, 384>}, {pipeline_mode = #tpu.pipeline_mode<synchronous>, transform_indices = @transform_3, window_bounds = array<i64: 128, 384>}, {pipeline_mode = #tpu.pipeline_mode<synchronous>, transform_indices = @transform_4, window_bounds = array<i64: 1, 384>}, {pipeline_mode = #tpu.pipeline_mode<synchronous>, transform_indices = @transform_5, window_bounds = array<i64: 64, 384>}, {pipeline_mode = #tpu.pipeline_mode<synchronous>, transform_indices = @transform_6, window_bounds = array<i64: 1, 64>}, {pipeline_mode = #tpu.pipeline_mode<synchronous>, transform_indices = @transform_7, window_bounds = array<i64: 64, 128>}, {pipeline_mode = #tpu.pipeline_mode<synchronous>, transform_indices = @transform_8, window_bounds = array<i64: 1, 128>}, {transform_indices = @transform_9, window_bounds = array<i64: 8, 128>}]} {
    %c0_i32 = arith.constant 0 : i32
    %0 = arith.cmpi eq, %arg1, %c0_i32 : i32
    %1 = arith.extui %0 : i1 to i32
    %c0_i32_0 = arith.constant 0 : i32
    %2 = arith.cmpi ne, %1, %c0_i32_0 : i32
    scf.if %2 {
      %cst = arith.constant 0.000000e+00 : f32
      %12 = vector.broadcast %cst : f32 to vector<8x64xf32>
      %c0 = arith.constant 0 : index
      %c0_6 = arith.constant 0 : index
      %13 = vector.load %arg12[%c0, %c0_6] : memref<8x64xf32, #tpu.memory_space<vmem>>, vector<8x64xf32>
      tpu.vector_store %arg12[%c0, %c0_6], %12 {strides = array<i32>} : memref<8x64xf32, #tpu.memory_space<vmem>>, vector<8x64xf32>,
    } else {
    }
    %c1_i32 = arith.constant 1 : i32
    %3 = arith.cmpi slt, %arg1, %c1_i32 : i32
    %4 = arith.extui %3 : i1 to i32
    %c0_i32_1 = arith.constant 0 : i32
    %5 = arith.cmpi ne, %4, %c0_i32_1 : i32
    scf.if %5 {
      %c1_i32_6 = arith.constant 1 : i32
      %12 = arith.andi %arg1, %c1_i32_6 : i32
      %c64_i32 = arith.constant 64 : i32
      %13 = arith.muli %12, %c64_i32 : i32
      %14 = tpu.assume_multiple %13, 64 : i32
      %c0 = arith.constant 0 : index
      %c0_7 = arith.constant 0 : index
      %c0_8 = arith.constant 0 : index
      %15 = vector.load %arg2[%c0, %c0_7, %c0_8] : memref<1x64x128xbf16, #tpu.memory_space<vmem>>, vector<1x64x128xbf16>
      %16 = vector.shape_cast %15 : vector<1x64x128xbf16> to vector<64x128xbf16>
      %c0_9 = arith.constant 0 : index
      %c0_10 = arith.constant 0 : index
      %c0_11 = arith.constant 0 : index
      %17 = vector.load %arg3[%c0_9, %c0_10, %c0_11] : memref<1x64x128xbf16, #tpu.memory_space<vmem>>, vector<1x64x128xbf16>
      %18 = vector.shape_cast %17 : vector<1x64x128xbf16> to vector<64x128xbf16>
      %c0_12 = arith.constant 0 : index
      %c0_13 = arith.constant 0 : index
      %19 = vector.load %arg4[%c0_12, %c0_13] : memref<128x384xbf16, #tpu.memory_space<vmem>>, vector<128x384xbf16>
      %cst = arith.constant dense<0.000000e+00> : vector<64x384xf32>
      %20 = tpu.matmul %16, %19, %cst {dimension_numbers = #tpu.dot_dimension_numbers<[1], [0], [0], [1], [0, 0, 1, 1], [], []>} : vector<64x128xbf16>, vector<128x384xbf16>, vector<64x384xf32> -> vector<64x384xf32>
      %c0_14 = arith.constant 0 : index
      %c0_15 = arith.constant 0 : index
      %21 = vector.load %arg5[%c0_14, %c0_15] : memref<128x384xbf16, #tpu.memory_space<vmem>>, vector<128x384xbf16>
      %cst_16 = arith.constant dense<0.000000e+00> : vector<64x384xf32>
      %22 = tpu.matmul %18, %21, %cst_16 {dimension_numbers = #tpu.dot_dimension_numbers<[1], [0], [0], [1], [0, 0, 1, 1], [], []>} : vector<64x128xbf16>, vector<128x384xbf16>, vector<64x384xf32> -> vector<64x384xf32>
      %23 = arith.addf %20, %22 : vector<64x384xf32>
      %c0_17 = arith.constant 0 : index
      %c0_18 = arith.constant 0 : index
      %24 = vector.load %arg6[%c0_17, %c0_18] : memref<1x384xf32, #tpu.memory_space<vmem>>, vector<1x384xf32>
      %25 = vector.broadcast %24 : vector<1x384xf32> to vector<64x384xf32>
      %26 = arith.addf %23, %25 : vector<64x384xf32>
      %27 = arith.index_cast %14 : i32 to index
      %c0_19 = arith.constant 0 : index
      %28 = vector.load %arg13[%27, %c0_19] : memref<128x384xf32, #tpu.memory_space<vmem>>, vector<64x384xf32>
      tpu.vector_store %arg13[%27, %c0_19], %26 {strides = array<i32>} : memref<128x384xf32, #tpu.memory_space<vmem>>, vector<64x384xf32>,
    } else {
    }
    %c1_i32_2 = arith.constant 1 : i32
    %6 = arith.cmpi sge, %arg1, %c1_i32_2 : i32
    %7 = arith.extui %6 : i1 to i32
    %c0_i32_3 = arith.constant 0 : i32
    %8 = arith.cmpi ne, %7, %c0_i32_3 : i32
    scf.if %8 {
      %c1_i32_6 = arith.constant 1 : i32
      %12 = arith.subi %arg1, %c1_i32_6 : i32
      %c1_i32_7 = arith.constant 1 : i32
      %13 = arith.andi %12, %c1_i32_7 : i32
      %c64_i32 = arith.constant 64 : i32
      %14 = arith.muli %13, %c64_i32 : i32
      %15 = tpu.assume_multiple %14, 64 : i32
      %c0 = arith.constant 0 : index
      %c0_8 = arith.constant 0 : index
      %16 = vector.load %arg7[%c0, %c0_8] : memref<64x384xbf16, #tpu.memory_space<vmem>>, vector<64x384xbf16>
      %c0_9 = arith.constant 0 : index
      %c0_10 = arith.constant 0 : index
      %17 = vector.load %arg8[%c0_9, %c0_10] : memref<1x64xf32, #tpu.memory_space<vmem>>, vector<1x64xf32>
      %c0_11 = arith.constant 0 : index
      %c0_12 = arith.constant 0 : index
      %18 = vector.load %arg12[%c0_11, %c0_12] : memref<8x64xf32, #tpu.memory_space<vmem>>, vector<8x64xf32>
      %c0_i32_13 = arith.constant 0 : i32
      %c8_i32 = arith.constant 8 : i32
      %19 = arith.muli %c0_i32_13, %c8_i32 : i32
      %20 = arith.addi %15, %19 : i32
      %21 = tpu.assume_multiple %20, 8 : i32
      %22 = arith.index_cast %21 : i32 to index
      %c0_14 = arith.constant 0 : index
      %23 = vector.load %arg13[%22, %c0_14] : memref<128x384xf32, #tpu.memory_space<vmem>>, vector<8x384xf32>
      %24 = arith.truncf %18 : vector<8x64xf32> to vector<8x64xbf16>
      %cst = arith.constant dense<0.000000e+00> : vector<8x384xf32>
      %25 = tpu.matmul %24, %16, %cst {dimension_numbers = #tpu.dot_dimension_numbers<[1], [0], [0], [1], [0, 0, 1, 1], [], []>} : vector<8x64xbf16>, vector<64x384xbf16>, vector<8x384xf32> -> vector<8x384xf32>
      %26 = vector.extract_strided_slice %23 {offsets = [0, 0], sizes = [8, 64], strides = [1, 1]} : vector<8x384xf32> to vector<8x64xf32>
      %27 = vector.extract_strided_slice %25 {offsets = [0, 0], sizes = [8, 64], strides = [1, 1]} : vector<8x384xf32> to vector<8x64xf32>
      %28 = arith.addf %26, %27 : vector<8x64xf32>
      %29 = arith.negf %28 : vector<8x64xf32>
      %30 = math.exp %29 : vector<8x64xf32>
      %cst_15 = arith.constant 1.000000e+00 : f32
      %31 = vector.broadcast %cst_15 : f32 to vector<8x64xf32>
      %32 = arith.addf %31, %30 : vector<8x64xf32>
      %33 = arith.divf %31, %32 : vector<8x64xf32>
      %34 = vector.extract_strided_slice %23 {offsets = [0, 128], sizes = [8, 64], strides = [1, 1]} : vector<8x384xf32> to vector<8x64xf32>
      %35 = vector.extract_strided_slice %25 {offsets = [0, 128], sizes = [8, 64], strides = [1, 1]} : vector<8x384xf32> to vector<8x64xf32>
      %36 = arith.addf %34, %35 : vector<8x64xf32>
      %37 = arith.negf %36 : vector<8x64xf32>
      %38 = math.exp %37 : vector<8x64xf32>
      %cst_16 = arith.constant 1.000000e+00 : f32
      %39 = vector.broadcast %cst_16 : f32 to vector<8x64xf32>
      %40 = arith.addf %39, %38 : vector<8x64xf32>
      %41 = arith.divf %39, %40 : vector<8x64xf32>
      %42 = vector.extract_strided_slice %23 {offsets = [0, 256], sizes = [8, 64], strides = [1, 1]} : vector<8x384xf32> to vector<8x64xf32>
      %43 = vector.extract_strided_slice %25 {offsets = [0, 256], sizes = [8, 64], strides = [1, 1]} : vector<8x384xf32> to vector<8x64xf32>
      %44 = vector.broadcast %17 : vector<1x64xf32> to vector<8x64xf32>
      %45 = arith.addf %43, %44 : vector<8x64xf32>
      %46 = arith.mulf %33, %45 : vector<8x64xf32>
      %47 = arith.addf %42, %46 : vector<8x64xf32>
      %48 = math.tanh %47 : vector<8x64xf32>
      %cst_17 = arith.constant 1.000000e+00 : f32
      %49 = vector.broadcast %cst_17 : f32 to vector<8x64xf32>
      %50 = arith.subf %49, %41 : vector<8x64xf32>
      %51 = arith.mulf %50, %48 : vector<8x64xf32>
      %52 = arith.mulf %41, %18 : vector<8x64xf32>
      %53 = arith.addf %51, %52 : vector<8x64xf32>
      %c1_i32_18 = arith.constant 1 : i32
      %c8_i32_19 = arith.constant 8 : i32
      %54 = arith.muli %c1_i32_18, %c8_i32_19 : i32
      %55 = arith.addi %15, %54 : i32
      %56 = tpu.assume_multiple %55, 8 : i32
      %57 = arith.index_cast %56 : i32 to index
      %c0_20 = arith.constant 0 : index
      %58 = vector.load %arg13[%57, %c0_20] : memref<128x384xf32, #tpu.memory_space<vmem>>, vector<8x384xf32>
      %59 = arith.truncf %53 : vector<8x64xf32> to vector<8x64xbf16>
      %cst_21 = arith.constant dense<0.000000e+00> : vector<8x384xf32>
      %60 = tpu.matmul %59, %16, %cst_21 {dimension_numbers = #tpu.dot_dimension_numbers<[1], [0], [0], [1], [0, 0, 1, 1], [], []>} : vector<8x64xbf16>, vector<64x384xbf16>, vector<8x384xf32> -> vector<8x384xf32>
      %61 = vector.extract_strided_slice %58 {offsets = [0, 0], sizes = [8, 64], strides = [1, 1]} : vector<8x384xf32> to vector<8x64xf32>
      %62 = vector.extract_strided_slice %60 {offsets = [0, 0], sizes = [8, 64], strides = [1, 1]} : vector<8x384xf32> to vector<8x64xf32>
      %63 = arith.addf %61, %62 : vector<8x64xf32>
      %64 = arith.negf %63 : vector<8x64xf32>
      %65 = math.exp %64 : vector<8x64xf32>
      %cst_22 = arith.constant 1.000000e+00 : f32
      %66 = vector.broadcast %cst_22 : f32 to vector<8x64xf32>
      %67 = arith.addf %66, %65 : vector<8x64xf32>
      %68 = arith.divf %66, %67 : vector<8x64xf32>
      %69 = vector.extract_strided_slice %58 {offsets = [0, 128], sizes = [8, 64], strides = [1, 1]} : vector<8x384xf32> to vector<8x64xf32>
      %70 = vector.extract_strided_slice %60 {offsets = [0, 128], sizes = [8, 64], strides = [1, 1]} : vector<8x384xf32> to vector<8x64xf32>
      %71 = arith.addf %69, %70 : vector<8x64xf32>
      %72 = arith.negf %71 : vector<8x64xf32>
      %73 = math.exp %72 : vector<8x64xf32>
      %cst_23 = arith.constant 1.000000e+00 : f32
      %74 = vector.broadcast %cst_23 : f32 to vector<8x64xf32>
      %75 = arith.addf %74, %73 : vector<8x64xf32>
      %76 = arith.divf %74, %75 : vector<8x64xf32>
      %77 = vector.extract_strided_slice %58 {offsets = [0, 256], sizes = [8, 64], strides = [1, 1]} : vector<8x384xf32> to vector<8x64xf32>
      %78 = vector.extract_strided_slice %60 {offsets = [0, 256], sizes = [8, 64], strides = [1, 1]} : vector<8x384xf32> to vector<8x64xf32>
      %79 = vector.broadcast %17 : vector<1x64xf32> to vector<8x64xf32>
      %80 = arith.addf %78, %79 : vector<8x64xf32>
      %81 = arith.mulf %68, %80 : vector<8x64xf32>
      %82 = arith.addf %77, %81 : vector<8x64xf32>
      %83 = math.tanh %82 : vector<8x64xf32>
      %cst_24 = arith.constant 1.000000e+00 : f32
      %84 = vector.broadcast %cst_24 : f32 to vector<8x64xf32>
      %85 = arith.subf %84, %76 : vector<8x64xf32>
      %86 = arith.mulf %85, %83 : vector<8x64xf32>
      %87 = arith.mulf %76, %53 : vector<8x64xf32>
      %88 = arith.addf %86, %87 : vector<8x64xf32>
      %c2_i32 = arith.constant 2 : i32
      %c8_i32_25 = arith.constant 8 : i32
      %89 = arith.muli %c2_i32, %c8_i32_25 : i32
      %90 = arith.addi %15, %89 : i32
      %91 = tpu.assume_multiple %90, 8 : i32
      %92 = arith.index_cast %91 : i32 to index
      %c0_26 = arith.constant 0 : index
      %93 = vector.load %arg13[%92, %c0_26] : memref<128x384xf32, #tpu.memory_space<vmem>>, vector<8x384xf32>
      %94 = arith.truncf %88 : vector<8x64xf32> to vector<8x64xbf16>
      %cst_27 = arith.constant dense<0.000000e+00> : vector<8x384xf32>
      %95 = tpu.matmul %94, %16, %cst_27 {dimension_numbers = #tpu.dot_dimension_numbers<[1], [0], [0], [1], [0, 0, 1, 1], [], []>} : vector<8x64xbf16>, vector<64x384xbf16>, vector<8x384xf32> -> vector<8x384xf32>
      %96 = vector.extract_strided_slice %93 {offsets = [0, 0], sizes = [8, 64], strides = [1, 1]} : vector<8x384xf32> to vector<8x64xf32>
      %97 = vector.extract_strided_slice %95 {offsets = [0, 0], sizes = [8, 64], strides = [1, 1]} : vector<8x384xf32> to vector<8x64xf32>
      %98 = arith.addf %96, %97 : vector<8x64xf32>
      %99 = arith.negf %98 : vector<8x64xf32>
      %100 = math.exp %99 : vector<8x64xf32>
      %cst_28 = arith.constant 1.000000e+00 : f32
      %101 = vector.broadcast %cst_28 : f32 to vector<8x64xf32>
      %102 = arith.addf %101, %100 : vector<8x64xf32>
      %103 = arith.divf %101, %102 : vector<8x64xf32>
      %104 = vector.extract_strided_slice %93 {offsets = [0, 128], sizes = [8, 64], strides = [1, 1]} : vector<8x384xf32> to vector<8x64xf32>
      %105 = vector.extract_strided_slice %95 {offsets = [0, 128], sizes = [8, 64], strides = [1, 1]} : vector<8x384xf32> to vector<8x64xf32>
      %106 = arith.addf %104, %105 : vector<8x64xf32>
      %107 = arith.negf %106 : vector<8x64xf32>
      %108 = math.exp %107 : vector<8x64xf32>
      %cst_29 = arith.constant 1.000000e+00 : f32
      %109 = vector.broadcast %cst_29 : f32 to vector<8x64xf32>
      %110 = arith.addf %109, %108 : vector<8x64xf32>
      %111 = arith.divf %109, %110 : vector<8x64xf32>
      %112 = vector.extract_strided_slice %93 {offsets = [0, 256], sizes = [8, 64], strides = [1, 1]} : vector<8x384xf32> to vector<8x64xf32>
      %113 = vector.extract_strided_slice %95 {offsets = [0, 256], sizes = [8, 64], strides = [1, 1]} : vector<8x384xf32> to vector<8x64xf32>
      %114 = vector.broadcast %17 : vector<1x64xf32> to vector<8x64xf32>
      %115 = arith.addf %113, %114 : vector<8x64xf32>
      %116 = arith.mulf %103, %115 : vector<8x64xf32>
      %117 = arith.addf %112, %116 : vector<8x64xf32>
      %118 = math.tanh %117 : vector<8x64xf32>
      %cst_30 = arith.constant 1.000000e+00 : f32
      %119 = vector.broadcast %cst_30 : f32 to vector<8x64xf32>
      %120 = arith.subf %119, %111 : vector<8x64xf32>
      %121 = arith.mulf %120, %118 : vector<8x64xf32>
      %122 = arith.mulf %111, %88 : vector<8x64xf32>
      %123 = arith.addf %121, %122 : vector<8x64xf32>
      %c3_i32 = arith.constant 3 : i32
      %c8_i32_31 = arith.constant 8 : i32
      %124 = arith.muli %c3_i32, %c8_i32_31 : i32
      %125 = arith.addi %15, %124 : i32
      %126 = tpu.assume_multiple %125, 8 : i32
      %127 = arith.index_cast %126 : i32 to index
      %c0_32 = arith.constant 0 : index
      %128 = vector.load %arg13[%127, %c0_32] : memref<128x384xf32, #tpu.memory_space<vmem>>, vector<8x384xf32>
      %129 = arith.truncf %123 : vector<8x64xf32> to vector<8x64xbf16>
      %cst_33 = arith.constant dense<0.000000e+00> : vector<8x384xf32>
      %130 = tpu.matmul %129, %16, %cst_33 {dimension_numbers = #tpu.dot_dimension_numbers<[1], [0], [0], [1], [0, 0, 1, 1], [], []>} : vector<8x64xbf16>, vector<64x384xbf16>, vector<8x384xf32> -> vector<8x384xf32>
      %131 = vector.extract_strided_slice %128 {offsets = [0, 0], sizes = [8, 64], strides = [1, 1]} : vector<8x384xf32> to vector<8x64xf32>
      %132 = vector.extract_strided_slice %130 {offsets = [0, 0], sizes = [8, 64], strides = [1, 1]} : vector<8x384xf32> to vector<8x64xf32>
      %133 = arith.addf %131, %132 : vector<8x64xf32>
      %134 = arith.negf %133 : vector<8x64xf32>
      %135 = math.exp %134 : vector<8x64xf32>
      %cst_34 = arith.constant 1.000000e+00 : f32
      %136 = vector.broadcast %cst_34 : f32 to vector<8x64xf32>
      %137 = arith.addf %136, %135 : vector<8x64xf32>
      %138 = arith.divf %136, %137 : vector<8x64xf32>
      %139 = vector.extract_strided_slice %128 {offsets = [0, 128], sizes = [8, 64], strides = [1, 1]} : vector<8x384xf32> to vector<8x64xf32>
      %140 = vector.extract_strided_slice %130 {offsets = [0, 128], sizes = [8, 64], strides = [1, 1]} : vector<8x384xf32> to vector<8x64xf32>
      %141 = arith.addf %139, %140 : vector<8x64xf32>
      %142 = arith.negf %141 : vector<8x64xf32>
      %143 = math.exp %142 : vector<8x64xf32>
      %cst_35 = arith.constant 1.000000e+00 : f32
      %144 = vector.broadcast %cst_35 : f32 to vector<8x64xf32>
      %145 = arith.addf %144, %143 : vector<8x64xf32>
      %146 = arith.divf %144, %145 : vector<8x64xf32>
      %147 = vector.extract_strided_slice %128 {offsets = [0, 256], sizes = [8, 64], strides = [1, 1]} : vector<8x384xf32> to vector<8x64xf32>
      %148 = vector.extract_strided_slice %130 {offsets = [0, 256], sizes = [8, 64], strides = [1, 1]} : vector<8x384xf32> to vector<8x64xf32>
      %149 = vector.broadcast %17 : vector<1x64xf32> to vector<8x64xf32>
      %150 = arith.addf %148, %149 : vector<8x64xf32>
      %151 = arith.mulf %138, %150 : vector<8x64xf32>
      %152 = arith.addf %147, %151 : vector<8x64xf32>
      %153 = math.tanh %152 : vector<8x64xf32>
      %cst_36 = arith.constant 1.000000e+00 : f32
      %154 = vector.broadcast %cst_36 : f32 to vector<8x64xf32>
      %155 = arith.subf %154, %146 : vector<8x64xf32>
      %156 = arith.mulf %155, %153 : vector<8x64xf32>
      %157 = arith.mulf %146, %123 : vector<8x64xf32>
      %158 = arith.addf %156, %157 : vector<8x64xf32>
      %c4_i32 = arith.constant 4 : i32
      %c8_i32_37 = arith.constant 8 : i32
      %159 = arith.muli %c4_i32, %c8_i32_37 : i32
      %160 = arith.addi %15, %159 : i32
      %161 = tpu.assume_multiple %160, 8 : i32
      %162 = arith.index_cast %161 : i32 to index
      %c0_38 = arith.constant 0 : index
      %163 = vector.load %arg13[%162, %c0_38] : memref<128x384xf32, #tpu.memory_space<vmem>>, vector<8x384xf32>
      %164 = arith.truncf %158 : vector<8x64xf32> to vector<8x64xbf16>
      %cst_39 = arith.constant dense<0.000000e+00> : vector<8x384xf32>
      %165 = tpu.matmul %164, %16, %cst_39 {dimension_numbers = #tpu.dot_dimension_numbers<[1], [0], [0], [1], [0, 0, 1, 1], [], []>} : vector<8x64xbf16>, vector<64x384xbf16>, vector<8x384xf32> -> vector<8x384xf32>
      %166 = vector.extract_strided_slice %163 {offsets = [0, 0], sizes = [8, 64], strides = [1, 1]} : vector<8x384xf32> to vector<8x64xf32>
      %167 = vector.extract_strided_slice %165 {offsets = [0, 0], sizes = [8, 64], strides = [1, 1]} : vector<8x384xf32> to vector<8x64xf32>
      %168 = arith.addf %166, %167 : vector<8x64xf32>
      %169 = arith.negf %168 : vector<8x64xf32>
      %170 = math.exp %169 : vector<8x64xf32>
      %cst_40 = arith.constant 1.000000e+00 : f32
      %171 = vector.broadcast %cst_40 : f32 to vector<8x64xf32>
      %172 = arith.addf %171, %170 : vector<8x64xf32>
      %173 = arith.divf %171, %172 : vector<8x64xf32>
      %174 = vector.extract_strided_slice %163 {offsets = [0, 128], sizes = [8, 64], strides = [1, 1]} : vector<8x384xf32> to vector<8x64xf32>
      %175 = vector.extract_strided_slice %165 {offsets = [0, 128], sizes = [8, 64], strides = [1, 1]} : vector<8x384xf32> to vector<8x64xf32>
      %176 = arith.addf %174, %175 : vector<8x64xf32>
      %177 = arith.negf %176 : vector<8x64xf32>
      %178 = math.exp %177 : vector<8x64xf32>
      %cst_41 = arith.constant 1.000000e+00 : f32
      %179 = vector.broadcast %cst_41 : f32 to vector<8x64xf32>
      %180 = arith.addf %179, %178 : vector<8x64xf32>
      %181 = arith.divf %179, %180 : vector<8x64xf32>
      %182 = vector.extract_strided_slice %163 {offsets = [0, 256], sizes = [8, 64], strides = [1, 1]} : vector<8x384xf32> to vector<8x64xf32>
      %183 = vector.extract_strided_slice %165 {offsets = [0, 256], sizes = [8, 64], strides = [1, 1]} : vector<8x384xf32> to vector<8x64xf32>
      %184 = vector.broadcast %17 : vector<1x64xf32> to vector<8x64xf32>
      %185 = arith.addf %183, %184 : vector<8x64xf32>
      %186 = arith.mulf %173, %185 : vector<8x64xf32>
      %187 = arith.addf %182, %186 : vector<8x64xf32>
      %188 = math.tanh %187 : vector<8x64xf32>
      %cst_42 = arith.constant 1.000000e+00 : f32
      %189 = vector.broadcast %cst_42 : f32 to vector<8x64xf32>
      %190 = arith.subf %189, %181 : vector<8x64xf32>
      %191 = arith.mulf %190, %188 : vector<8x64xf32>
      %192 = arith.mulf %181, %158 : vector<8x64xf32>
      %193 = arith.addf %191, %192 : vector<8x64xf32>
      %c5_i32 = arith.constant 5 : i32
      %c8_i32_43 = arith.constant 8 : i32
      %194 = arith.muli %c5_i32, %c8_i32_43 : i32
      %195 = arith.addi %15, %194 : i32
      %196 = tpu.assume_multiple %195, 8 : i32
      %197 = arith.index_cast %196 : i32 to index
      %c0_44 = arith.constant 0 : index
      %198 = vector.load %arg13[%197, %c0_44] : memref<128x384xf32, #tpu.memory_space<vmem>>, vector<8x384xf32>
      %199 = arith.truncf %193 : vector<8x64xf32> to vector<8x64xbf16>
      %cst_45 = arith.constant dense<0.000000e+00> : vector<8x384xf32>
      %200 = tpu.matmul %199, %16, %cst_45 {dimension_numbers = #tpu.dot_dimension_numbers<[1], [0], [0], [1], [0, 0, 1, 1], [], []>} : vector<8x64xbf16>, vector<64x384xbf16>, vector<8x384xf32> -> vector<8x384xf32>
      %201 = vector.extract_strided_slice %198 {offsets = [0, 0], sizes = [8, 64], strides = [1, 1]} : vector<8x384xf32> to vector<8x64xf32>
      %202 = vector.extract_strided_slice %200 {offsets = [0, 0], sizes = [8, 64], strides = [1, 1]} : vector<8x384xf32> to vector<8x64xf32>
      %203 = arith.addf %201, %202 : vector<8x64xf32>
      %204 = arith.negf %203 : vector<8x64xf32>
      %205 = math.exp %204 : vector<8x64xf32>
      %cst_46 = arith.constant 1.000000e+00 : f32
      %206 = vector.broadcast %cst_46 : f32 to vector<8x64xf32>
      %207 = arith.addf %206, %205 : vector<8x64xf32>
      %208 = arith.divf %206, %207 : vector<8x64xf32>
      %209 = vector.extract_strided_slice %198 {offsets = [0, 128], sizes = [8, 64], strides = [1, 1]} : vector<8x384xf32> to vector<8x64xf32>
      %210 = vector.extract_strided_slice %200 {offsets = [0, 128], sizes = [8, 64], strides = [1, 1]} : vector<8x384xf32> to vector<8x64xf32>
      %211 = arith.addf %209, %210 : vector<8x64xf32>
      %212 = arith.negf %211 : vector<8x64xf32>
      %213 = math.exp %212 : vector<8x64xf32>
      %cst_47 = arith.constant 1.000000e+00 : f32
      %214 = vector.broadcast %cst_47 : f32 to vector<8x64xf32>
      %215 = arith.addf %214, %213 : vector<8x64xf32>
      %216 = arith.divf %214, %215 : vector<8x64xf32>
      %217 = vector.extract_strided_slice %198 {offsets = [0, 256], sizes = [8, 64], strides = [1, 1]} : vector<8x384xf32> to vector<8x64xf32>
      %218 = vector.extract_strided_slice %200 {offsets = [0, 256], sizes = [8, 64], strides = [1, 1]} : vector<8x384xf32> to vector<8x64xf32>
      %219 = vector.broadcast %17 : vector<1x64xf32> to vector<8x64xf32>
      %220 = arith.addf %218, %219 : vector<8x64xf32>
      %221 = arith.mulf %208, %220 : vector<8x64xf32>
      %222 = arith.addf %217, %221 : vector<8x64xf32>
      %223 = math.tanh %222 : vector<8x64xf32>
      %cst_48 = arith.constant 1.000000e+00 : f32
      %224 = vector.broadcast %cst_48 : f32 to vector<8x64xf32>
      %225 = arith.subf %224, %216 : vector<8x64xf32>
      %226 = arith.mulf %225, %223 : vector<8x64xf32>
      %227 = arith.mulf %216, %193 : vector<8x64xf32>
      %228 = arith.addf %226, %227 : vector<8x64xf32>
      %c6_i32 = arith.constant 6 : i32
      %c8_i32_49 = arith.constant 8 : i32
      %229 = arith.muli %c6_i32, %c8_i32_49 : i32
      %230 = arith.addi %15, %229 : i32
      %231 = tpu.assume_multiple %230, 8 : i32
      %232 = arith.index_cast %231 : i32 to index
      %c0_50 = arith.constant 0 : index
      %233 = vector.load %arg13[%232, %c0_50] : memref<128x384xf32, #tpu.memory_space<vmem>>, vector<8x384xf32>
      %234 = arith.truncf %228 : vector<8x64xf32> to vector<8x64xbf16>
      %cst_51 = arith.constant dense<0.000000e+00> : vector<8x384xf32>
      %235 = tpu.matmul %234, %16, %cst_51 {dimension_numbers = #tpu.dot_dimension_numbers<[1], [0], [0], [1], [0, 0, 1, 1], [], []>} : vector<8x64xbf16>, vector<64x384xbf16>, vector<8x384xf32> -> vector<8x384xf32>
      %236 = vector.extract_strided_slice %233 {offsets = [0, 0], sizes = [8, 64], strides = [1, 1]} : vector<8x384xf32> to vector<8x64xf32>
      %237 = vector.extract_strided_slice %235 {offsets = [0, 0], sizes = [8, 64], strides = [1, 1]} : vector<8x384xf32> to vector<8x64xf32>
      %238 = arith.addf %236, %237 : vector<8x64xf32>
      %239 = arith.negf %238 : vector<8x64xf32>
      %240 = math.exp %239 : vector<8x64xf32>
      %cst_52 = arith.constant 1.000000e+00 : f32
      %241 = vector.broadcast %cst_52 : f32 to vector<8x64xf32>
      %242 = arith.addf %241, %240 : vector<8x64xf32>
      %243 = arith.divf %241, %242 : vector<8x64xf32>
      %244 = vector.extract_strided_slice %233 {offsets = [0, 128], sizes = [8, 64], strides = [1, 1]} : vector<8x384xf32> to vector<8x64xf32>
      %245 = vector.extract_strided_slice %235 {offsets = [0, 128], sizes = [8, 64], strides = [1, 1]} : vector<8x384xf32> to vector<8x64xf32>
      %246 = arith.addf %244, %245 : vector<8x64xf32>
      %247 = arith.negf %246 : vector<8x64xf32>
      %248 = math.exp %247 : vector<8x64xf32>
      %cst_53 = arith.constant 1.000000e+00 : f32
      %249 = vector.broadcast %cst_53 : f32 to vector<8x64xf32>
      %250 = arith.addf %249, %248 : vector<8x64xf32>
      %251 = arith.divf %249, %250 : vector<8x64xf32>
      %252 = vector.extract_strided_slice %233 {offsets = [0, 256], sizes = [8, 64], strides = [1, 1]} : vector<8x384xf32> to vector<8x64xf32>
      %253 = vector.extract_strided_slice %235 {offsets = [0, 256], sizes = [8, 64], strides = [1, 1]} : vector<8x384xf32> to vector<8x64xf32>
      %254 = vector.broadcast %17 : vector<1x64xf32> to vector<8x64xf32>
      %255 = arith.addf %253, %254 : vector<8x64xf32>
      %256 = arith.mulf %243, %255 : vector<8x64xf32>
      %257 = arith.addf %252, %256 : vector<8x64xf32>
      %258 = math.tanh %257 : vector<8x64xf32>
      %cst_54 = arith.constant 1.000000e+00 : f32
      %259 = vector.broadcast %cst_54 : f32 to vector<8x64xf32>
      %260 = arith.subf %259, %251 : vector<8x64xf32>
      %261 = arith.mulf %260, %258 : vector<8x64xf32>
      %262 = arith.mulf %251, %228 : vector<8x64xf32>
      %263 = arith.addf %261, %262 : vector<8x64xf32>
      %c7_i32 = arith.constant 7 : i32
      %c8_i32_55 = arith.constant 8 : i32
      %264 = arith.muli %c7_i32, %c8_i32_55 : i32
      %265 = arith.addi %15, %264 : i32
      %266 = tpu.assume_multiple %265, 8 : i32
      %267 = arith.index_cast %266 : i32 to index
      %c0_56 = arith.constant 0 : index
      %268 = vector.load %arg13[%267, %c0_56] : memref<128x384xf32, #tpu.memory_space<vmem>>, vector<8x384xf32>
      %269 = arith.truncf %263 : vector<8x64xf32> to vector<8x64xbf16>
      %cst_57 = arith.constant dense<0.000000e+00> : vector<8x384xf32>
      %270 = tpu.matmul %269, %16, %cst_57 {dimension_numbers = #tpu.dot_dimension_numbers<[1], [0], [0], [1], [0, 0, 1, 1], [], []>} : vector<8x64xbf16>, vector<64x384xbf16>, vector<8x384xf32> -> vector<8x384xf32>
      %271 = vector.extract_strided_slice %268 {offsets = [0, 0], sizes = [8, 64], strides = [1, 1]} : vector<8x384xf32> to vector<8x64xf32>
      %272 = vector.extract_strided_slice %270 {offsets = [0, 0], sizes = [8, 64], strides = [1, 1]} : vector<8x384xf32> to vector<8x64xf32>
      %273 = arith.addf %271, %272 : vector<8x64xf32>
      %274 = arith.negf %273 : vector<8x64xf32>
      %275 = math.exp %274 : vector<8x64xf32>
      %cst_58 = arith.constant 1.000000e+00 : f32
      %276 = vector.broadcast %cst_58 : f32 to vector<8x64xf32>
      %277 = arith.addf %276, %275 : vector<8x64xf32>
      %278 = arith.divf %276, %277 : vector<8x64xf32>
      %279 = vector.extract_strided_slice %268 {offsets = [0, 128], sizes = [8, 64], strides = [1, 1]} : vector<8x384xf32> to vector<8x64xf32>
      %280 = vector.extract_strided_slice %270 {offsets = [0, 128], sizes = [8, 64], strides = [1, 1]} : vector<8x384xf32> to vector<8x64xf32>
      %281 = arith.addf %279, %280 : vector<8x64xf32>
      %282 = arith.negf %281 : vector<8x64xf32>
      %283 = math.exp %282 : vector<8x64xf32>
      %cst_59 = arith.constant 1.000000e+00 : f32
      %284 = vector.broadcast %cst_59 : f32 to vector<8x64xf32>
      %285 = arith.addf %284, %283 : vector<8x64xf32>
      %286 = arith.divf %284, %285 : vector<8x64xf32>
      %287 = vector.extract_strided_slice %268 {offsets = [0, 256], sizes = [8, 64], strides = [1, 1]} : vector<8x384xf32> to vector<8x64xf32>
      %288 = vector.extract_strided_slice %270 {offsets = [0, 256], sizes = [8, 64], strides = [1, 1]} : vector<8x384xf32> to vector<8x64xf32>
      %289 = vector.broadcast %17 : vector<1x64xf32> to vector<8x64xf32>
      %290 = arith.addf %288, %289 : vector<8x64xf32>
      %291 = arith.mulf %278, %290 : vector<8x64xf32>
      %292 = arith.addf %287, %291 : vector<8x64xf32>
      %293 = math.tanh %292 : vector<8x64xf32>
      %cst_60 = arith.constant 1.000000e+00 : f32
      %294 = vector.broadcast %cst_60 : f32 to vector<8x64xf32>
      %295 = arith.subf %294, %286 : vector<8x64xf32>
      %296 = arith.mulf %295, %293 : vector<8x64xf32>
      %297 = arith.mulf %286, %263 : vector<8x64xf32>
      %298 = arith.addf %296, %297 : vector<8x64xf32>
      %c8_i32_61 = arith.constant 8 : i32
      %c0_62 = arith.constant 0 : index
      %c0_63 = arith.constant 0 : index
      %299 = vector.load %arg12[%c0_62, %c0_63] : memref<8x64xf32, #tpu.memory_space<vmem>>, vector<8x64xf32>
      tpu.vector_store %arg12[%c0_62, %c0_63], %298 {strides = array<i32>} : memref<8x64xf32, #tpu.memory_space<vmem>>, vector<8x64xf32>,
    } else {
    }
    %c1_i32_4 = arith.constant 1 : i32
    %9 = arith.cmpi eq, %arg1, %c1_i32_4 : i32
    %10 = arith.extui %9 : i1 to i32
    %c0_i32_5 = arith.constant 0 : i32
    %11 = arith.cmpi ne, %10, %c0_i32_5 : i32
    scf.if %11 {
      %c0 = arith.constant 0 : index
      %c0_6 = arith.constant 0 : index
      %12 = vector.load %arg12[%c0, %c0_6] : memref<8x64xf32, #tpu.memory_space<vmem>>, vector<8x64xf32>
      %13 = arith.truncf %12 : vector<8x64xf32> to vector<8x64xbf16>
      %c0_7 = arith.constant 0 : index
      %c0_8 = arith.constant 0 : index
      %14 = vector.load %arg9[%c0_7, %c0_8] : memref<64x128xbf16, #tpu.memory_space<vmem>>, vector<64x128xbf16>
      %cst = arith.constant dense<0.000000e+00> : vector<8x128xf32>
      %15 = tpu.matmul %13, %14, %cst {dimension_numbers = #tpu.dot_dimension_numbers<[1], [0], [0], [1], [0, 0, 1, 1], [], []>} : vector<8x64xbf16>, vector<64x128xbf16>, vector<8x128xf32> -> vector<8x128xf32>
      %c0_9 = arith.constant 0 : index
      %c0_10 = arith.constant 0 : index
      %16 = vector.load %arg10[%c0_9, %c0_10] : memref<1x128xf32, #tpu.memory_space<vmem>>, vector<1x128xf32>
      %17 = vector.broadcast %16 : vector<1x128xf32> to vector<8x128xf32>
      %18 = arith.addf %15, %17 : vector<8x128xf32>
      %c0_11 = arith.constant 0 : index
      %c0_12 = arith.constant 0 : index
      %19 = vector.load %arg11[%c0_11, %c0_12] : memref<8x128xf32, #tpu.memory_space<vmem>>, vector<8x128xf32>
      tpu.vector_store %arg11[%c0_11, %c0_12], %18 {strides = array<i32>} : memref<8x128xf32, #tpu.memory_space<vmem>>, vector<8x128xf32>,
    } else {
    }
    return
  }
  func.func @transform_0(%arg0: i32, %arg1: i32) -> (i32, i32, i32) {
    %c0_i32 = arith.constant 0 : i32
    %0 = arith.minsi %arg1, %c0_i32 : i32
    %c0_i32_0 = arith.constant 0 : i32
    %c0_i32_1 = arith.constant 0 : i32
    return %arg0, %0, %c0_i32_0 : i32, i32, i32
  }
  func.func @transform_1(%arg0: i32, %arg1: i32) -> (i32, i32, i32) {
    %c0_i32 = arith.constant 0 : i32
    %0 = arith.minsi %arg1, %c0_i32 : i32
    %c0_i32_0 = arith.constant 0 : i32
    %c0_i32_1 = arith.constant 0 : i32
    return %arg0, %0, %c0_i32_0 : i32, i32, i32
  }
  func.func @transform_2(%arg0: i32, %arg1: i32) -> (i32, i32) {
    %c0_i32 = arith.constant 0 : i32
    %c0_i32_0 = arith.constant 0 : i32
    %c0_i32_1 = arith.constant 0 : i32
    return %c0_i32, %c0_i32_0 : i32, i32
  }
  func.func @transform_3(%arg0: i32, %arg1: i32) -> (i32, i32) {
    %c0_i32 = arith.constant 0 : i32
    %c0_i32_0 = arith.constant 0 : i32
    %c0_i32_1 = arith.constant 0 : i32
    return %c0_i32, %c0_i32_0 : i32, i32
  }
  func.func @transform_4(%arg0: i32, %arg1: i32) -> (i32, i32) {
    %c0_i32 = arith.constant 0 : i32
    %c0_i32_0 = arith.constant 0 : i32
    %c0_i32_1 = arith.constant 0 : i32
    return %c0_i32, %c0_i32_0 : i32, i32
  }
  func.func @transform_5(%arg0: i32, %arg1: i32) -> (i32, i32) {
    %c0_i32 = arith.constant 0 : i32
    %c0_i32_0 = arith.constant 0 : i32
    %c0_i32_1 = arith.constant 0 : i32
    return %c0_i32, %c0_i32_0 : i32, i32
  }
  func.func @transform_6(%arg0: i32, %arg1: i32) -> (i32, i32) {
    %c0_i32 = arith.constant 0 : i32
    %c0_i32_0 = arith.constant 0 : i32
    %c0_i32_1 = arith.constant 0 : i32
    return %c0_i32, %c0_i32_0 : i32, i32
  }
  func.func @transform_7(%arg0: i32, %arg1: i32) -> (i32, i32) {
    %c0_i32 = arith.constant 0 : i32
    %c0_i32_0 = arith.constant 0 : i32
    %c0_i32_1 = arith.constant 0 : i32
    return %c0_i32, %c0_i32_0 : i32, i32
  }
  func.func @transform_8(%arg0: i32, %arg1: i32) -> (i32, i32) {
    %c0_i32 = arith.constant 0 : i32
    %c0_i32_0 = arith.constant 0 : i32
    %c0_i32_1 = arith.constant 0 : i32
    return %c0_i32, %c0_i32_0 : i32, i32
  }
  func.func @transform_9(%arg0: i32, %arg1: i32) -> (i32, i32) {
    %c0_i32 = arith.constant 0 : i32
    %c0_i32_0 = arith.constant 0 : i32
    return %arg0, %c0_i32 : i32, i32
  }
}

</mosaic_0001>

<llo_original>
// kernel: tpu_custom_call.1
$region0: #{tpu_custom_call.1}
  #allocation0 [shape = 'u32[]', space=smem, size = 0x4, offset = 0x4, fixed_abs, tag = 'smem constant byte address 0x4 - core index']
  #allocation1 [shape = 'u32[72,128]{1,0:T(1,128)}', space=vmem, size = 0x9000, scoped, tag = 'internal scratch']
  #allocation2 [shape = 'f32[8,64]{1,0:T(8,128)}', space=vmem, size = 0x1000, scoped, tag = 'scratch operand']
  #allocation3 [shape = 'f32[128,384]{1,0:T(8,128)}', space=vmem, size = 0x30000, scoped, tag = 'scratch operand']
  %s0 = inlined_call_operand.hbm [shape: bf16[1,64,128], index: 0, kind: input, shape index: {}]
  %s1 = inlined_call_operand.hbm [shape: bf16[1,64,128], index: 1, kind: input, shape index: {}]
  %s2 = inlined_call_operand.hbm [shape: bf16[128,384], index: 2, kind: input, shape index: {}]
  %s3 = inlined_call_operand.hbm [shape: bf16[128,384], index: 3, kind: input, shape index: {}]
  %s4 = inlined_call_operand.vmem [shape: f32[1,384], index: 4, kind: input, shape index: {}]
  %s5 = inlined_call_operand.hbm [shape: bf16[64,384], index: 5, kind: input, shape index: {}]
  %s6 = inlined_call_operand.vmem [shape: f32[1,64], index: 6, kind: input, shape index: {}]
  %s7 = inlined_call_operand.hbm [shape: bf16[64,128], index: 7, kind: input, shape index: {}]
  %s8 = inlined_call_operand.vmem [shape: f32[1,128], index: 8, kind: input, shape index: {}]
  %s9 = inlined_call_operand.hbm [shape: f32[8,128], index: 9, kind: output, shape index: {}]
  %s10 = sld [smem:[#allocation0]]
  $region109: #{tpu_custom_call.1} parent=0
    _
  %s12 = ssub.s32 1, %s10
  %s13 = scalar_select 0, %s12, %s10
  $region1: #{tpu_custom_call.1} parent=0
    #allocation4 [shape = 'u8[32768]{0}', space=vmem, size = 0x8000, scoped, tag = 'input window, operand 0']
    #allocation5 [shape = 's32[2]{0}', space=sflag, size = 0x8, scoped, tag = 'scoped memory for tpu_custom_call.1']
    #allocation6 [shape = 's32[2]{0}', space=sflag, size = 0x8, scoped, tag = 'scoped memory for tpu_custom_call.1']
    #allocation7 [shape = 'u8[32768]{0}', space=vmem, size = 0x8000, scoped, tag = 'input window, operand 1']
    #allocation8 [shape = 's32[2]{0}', space=sflag, size = 0x8, scoped, tag = 'scoped memory for tpu_custom_call.1']
    #allocation9 [shape = 'u8[98304]{0}', space=vmem, size = 0x18000, scoped, tag = 'input window, operand 2, single buffered']
    #allocation10 [shape = 'u8[98304]{0}', space=vmem, size = 0x18000, scoped, tag = 'input window, operand 3, single buffered']
    #allocation11 [shape = 's32[1]{0}', space=sflag, size = 0x4, scoped, tag = 'scoped memory for tpu_custom_call.1']
    #allocation12 [shape = 'u8[49152]{0}', space=vmem, size = 0xc000, scoped, tag = 'input window, operand 5, single buffered']
    #allocation13 [shape = 'u8[16384]{0}', space=vmem, size = 0x4000, scoped, tag = 'input window, operand 7, single buffered']
    #allocation14 [shape = 's32[1]{0}', space=sflag, size = 0x4, scoped, tag = 'scoped memory for tpu_custom_call.1']
    #allocation15 [shape = 'u8[4096]{0}', space=vmem, size = 0x1000, scoped, tag = 'output window, operand 0, single buffered']
    %14 = vsyncpa [#allocation5], 0
    %s15 = scalar_lea.sflag [#allocation5], 1
    %16 = vsyncpa %s15, 0
    %17 = vsyncpa [#allocation8], 0
    %s18 = scalar_lea.sflag [#allocation8], 1
    %19 = vsyncpa %s18, 0
    %20 = vsyncpa [#allocation11], 0
    %21 = vsyncpa [#allocation14], 0
    %22 = vsyncpa [#allocation6], 0
    loop: start=0, step=1, limit=4
    $region2: #{tpu_custom_call.1} parent=1 // loop_pre_header
      _
    $region3: #{tpu_custom_call.1} parent=1 // loop_header
      %s24 = sphi 0, %s28
      %p25 = scmp.ge.s32.totalorder %s24, 4
      %s31 = sphi 0, %s43
      %s32 = sphi 0, %s39
      %s33 = sphi 0, %s31
      %s34 = sphi 0, %s32
      %s35 = sphi 0, %s33
      %s36 = sphi 0, %s34
      %s52 = sphi 0, %s54
      %s55 = sphi 0, %s52
      %s56 = sphi 0, %s55
      %s72 = sphi 0, %s56
      %s84 = sphi 0, %s86
      %s87 = sphi 0, %s84
      %s88 = sphi 0, %s87
      %s104 = sphi 0, %s88
      %s108 = sphi 0, %s108
      %s110 = sphi 0, %s108
      %s111 = sphi 0, %s110
      %s125 = sphi 0, %s111
      %s129 = sphi 0, %s129
      %s131 = sphi 0, %s129
      %s132 = sphi 0, %s131
      %s146 = sphi 0, %s132
      %s150 = sphi 0, %s150
      %s152 = sphi 0, %s150
      %s153 = sphi 0, %s152
      %s167 = sphi 0, %s153
      %s171 = sphi 0, %s171
      %s173 = sphi 0, %s171
      %s174 = sphi 0, %s173
      %s188 = sphi 0, %s174
      %s192 = sphi 0, %s192
      %s194 = sphi 0, %s192
      %s195 = sphi 0, %s194
      %s209 = sphi 0, %s195
      %s213 = sphi 0, %s213
      %s215 = sphi 0, %s213
      %s216 = sphi 0, %s215
      %s230 = sphi 0, %s216
      %s234 = sphi 0, %s234
      %s236 = sphi 0, %s234
      %s237 = sphi 0, %s236
      %s251 = sphi 0, %s237
      %s257 = sphi 0, %s259
      %s260 = sphi 0, %s257
      %s261 = sphi 0, %s260
      %s277 = sphi 0, %s261
    $region4: #{tpu_custom_call.1} parent=1 // loop_header_branch
      %27 = sbr.rel (%p25) target = $region8
    $region5: #{tpu_custom_call.1} parent=1 // loop_body
      %s29 = ssub.s32 %s24, 1
      %s30 = ssub.s32 %s24, 2
      %s37 = sadd.s32 1, %s32
      %p38 = scmp.ge.s32.totalorder %s37, 2
      %s39 = scalar_select %p38, 0, %s37
      %s40 = sadd.s32 1, %s31
      %s41 = scalar_select %p38, %s40, %s31
      %p42 = scmp.ge.s32.totalorder %s41, 1
      %s43 = scalar_select %p42, 0, %s41
      %p44 = scmp.lt.s32.totalorder %s32, 0
      %s45 = scalar_select %p44, %s32, 0
      %p46 = scmp.lt.s32.totalorder %s39, 0
      %s47 = scalar_select %p46, %s39, 0
      %s48 = ssub.s32 %s31, %s43
      %s49 = ssub.s32 %s45, %s47
      %s50 = sor.u32 %s48, %s49
      %p51 = scmp.eq.s32.totalorder %s50, 0
      %s53 = sadd.s32 %s52, 1
      %s54 = scalar_select %p51, %s52, %s53
      %p57 = pneg %p51
      %p58 = scmp.eq.s32.totalorder %s24, 1
      %p59 = por %p57, %p58
      %p60 = scmp.ne.s32.totalorder %s52, %s55
      %p61 = scmp.eq.s32.totalorder %s24, 0
      %p62 = por %p60, %p61
      %p63 = scmp.ne.s32.totalorder %s52, %s55
      %p64 = scmp.eq.s32.totalorder %s29, 1
      %p65 = por %p63, %p64
      %p66 = scmp.ne.s32.totalorder %s55, %s56
      %p67 = scmp.eq.s32.totalorder %s29, 0
      %p68 = por %p66, %p67
      %p69 = scmp.ne.s32.totalorder %s55, %s56
      %p70 = scmp.eq.s32.totalorder %s30, 1
      %p71 = por %p69, %p70
      %p73 = scmp.ne.s32.totalorder %s56, %s72
      %p74 = scmp.eq.s32.totalorder %s30, 0
      %p75 = por %p73, %p74
      %p76 = scmp.lt.s32.totalorder %s32, 0
      %s77 = scalar_select %p76, %s32, 0
      %p78 = scmp.lt.s32.totalorder %s39, 0
      %s79 = scalar_select %p78, %s39, 0
      %s80 = ssub.s32 %s31, %s43
      %s81 = ssub.s32 %s77, %s79
      %s82 = sor.u32 %s80, %s81
      %p83 = scmp.eq.s32.totalorder %s82, 0
      %s85 = sadd.s32 %s84, 1
      %s86 = scalar_select %p83, %s84, %s85
      %p89 = pneg %p83
      %p90 = scmp.eq.s32.totalorder %s24, 1
      %p91 = por %p89, %p90
      %p92 = scmp.ne.s32.totalorder %s84, %s87
      %p93 = scmp.eq.s32.totalorder %s24, 0
      %p94 = por %p92, %p93
      %p95 = scmp.ne.s32.totalorder %s84, %s87
      %p96 = scmp.eq.s32.totalorder %s29, 1
      %p97 = por %p95, %p96
      %p98 = scmp.ne.s32.totalorder %s87, %s88
      %p99 = scmp.eq.s32.totalorder %s29, 0
      %p100 = por %p98, %p99
      %p101 = scmp.ne.s32.totalorder %s87, %s88
      %p102 = scmp.eq.s32.totalorder %s30, 1
      %p103 = por %p101, %p102
      %p105 = scmp.ne.s32.totalorder %s88, %s104
      %p106 = scmp.eq.s32.totalorder %s30, 0
      %p107 = por %p105, %p106
      %s109 = sadd.s32 %s108, 1
      %p112 = scmp.eq.s32.totalorder %s24, 1
      %p113 = scmp.ne.s32.totalorder %s108, %s110
      %p114 = scmp.eq.s32.totalorder %s24, 0
      %p115 = por %p113, %p114
      %p116 = scmp.ne.s32.totalorder %s108, %s110
      %p117 = scmp.eq.s32.totalorder %s29, 1
      %p118 = por %p116, %p117
      %p119 = scmp.ne.s32.totalorder %s110, %s111
      %p120 = scmp.eq.s32.totalorder %s29, 0
      %p121 = por %p119, %p120
      %p122 = scmp.ne.s32.totalorder %s110, %s111
      %p123 = scmp.eq.s32.totalorder %s30, 1
      %p124 = por %p122, %p123
      %p126 = scmp.ne.s32.totalorder %s111, %s125
      %p127 = scmp.eq.s32.totalorder %s30, 0
      %p128 = por %p126, %p127
      %s130 = sadd.s32 %s129, 1
      %p133 = scmp.eq.s32.totalorder %s24, 1
      %p134 = scmp.ne.s32.totalorder %s129, %s131
      %p135 = scmp.eq.s32.totalorder %s24, 0
      %p136 = por %p134, %p135
      %p137 = scmp.ne.s32.totalorder %s129, %s131
      %p138 = scmp.eq.s32.totalorder %s29, 1
      %p139 = por %p137, %p138
      %p140 = scmp.ne.s32.totalorder %s131, %s132
      %p141 = scmp.eq.s32.totalorder %s29, 0
      %p142 = por %p140, %p141
      %p143 = scmp.ne.s32.totalorder %s131, %s132
      %p144 = scmp.eq.s32.totalorder %s30, 1
      %p145 = por %p143, %p144
      %p147 = scmp.ne.s32.totalorder %s132, %s146
      %p148 = scmp.eq.s32.totalorder %s30, 0
      %p149 = por %p147, %p148
      %s151 = sadd.s32 %s150, 1
      %p154 = scmp.eq.s32.totalorder %s24, 1
      %p155 = scmp.ne.s32.totalorder %s150, %s152
      %p156 = scmp.eq.s32.totalorder %s24, 0
      %p157 = por %p155, %p156
      %p158 = scmp.ne.s32.totalorder %s150, %s152
      %p159 = scmp.eq.s32.totalorder %s29, 1
      %p160 = por %p158, %p159
      %p161 = scmp.ne.s32.totalorder %s152, %s153
      %p162 = scmp.eq.s32.totalorder %s29, 0
      %p163 = por %p161, %p162
      %p164 = scmp.ne.s32.totalorder %s152, %s153
      %p165 = scmp.eq.s32.totalorder %s30, 1
      %p166 = por %p164, %p165
      %p168 = scmp.ne.s32.totalorder %s153, %s167
      %p169 = scmp.eq.s32.totalorder %s30, 0
      %p170 = por %p168, %p169
      %s172 = sadd.s32 %s171, 1
      %p175 = scmp.eq.s32.totalorder %s24, 1
      %p176 = scmp.ne.s32.totalorder %s171, %s173
      %p177 = scmp.eq.s32.totalorder %s24, 0
      %p178 = por %p176, %p177
      %p179 = scmp.ne.s32.totalorder %s171, %s173
      %p180 = scmp.eq.s32.totalorder %s29, 1
      %p181 = por %p179, %p180
      %p182 = scmp.ne.s32.totalorder %s173, %s174
      %p183 = scmp.eq.s32.totalorder %s29, 0
      %p184 = por %p182, %p183
      %p185 = scmp.ne.s32.totalorder %s173, %s174
      %p186 = scmp.eq.s32.totalorder %s30, 1
      %p187 = por %p185, %p186
      %p189 = scmp.ne.s32.totalorder %s174, %s188
      %p190 = scmp.eq.s32.totalorder %s30, 0
      %p191 = por %p189, %p190
      %s193 = sadd.s32 %s192, 1
      %p196 = scmp.eq.s32.totalorder %s24, 1
      %p197 = scmp.ne.s32.totalorder %s192, %s194
      %p198 = scmp.eq.s32.totalorder %s24, 0
      %p199 = por %p197, %p198
      %p200 = scmp.ne.s32.totalorder %s192, %s194
      %p201 = scmp.eq.s32.totalorder %s29, 1
      %p202 = por %p200, %p201
      %p203 = scmp.ne.s32.totalorder %s194, %s195
      %p204 = scmp.eq.s32.totalorder %s29, 0
      %p205 = por %p203, %p204
      %p206 = scmp.ne.s32.totalorder %s194, %s195
      %p207 = scmp.eq.s32.totalorder %s30, 1
      %p208 = por %p206, %p207
      %p210 = scmp.ne.s32.totalorder %s195, %s209
      %p211 = scmp.eq.s32.totalorder %s30, 0
      %p212 = por %p210, %p211
      %s214 = sadd.s32 %s213, 1
      %p217 = scmp.eq.s32.totalorder %s24, 1
      %p218 = scmp.ne.s32.totalorder %s213, %s215
      %p219 = scmp.eq.s32.totalorder %s24, 0
      %p220 = por %p218, %p219
      %p221 = scmp.ne.s32.totalorder %s213, %s215
      %p222 = scmp.eq.s32.totalorder %s29, 1
      %p223 = por %p221, %p222
      %p224 = scmp.ne.s32.totalorder %s215, %s216
      %p225 = scmp.eq.s32.totalorder %s29, 0
      %p226 = por %p224, %p225
      %p227 = scmp.ne.s32.totalorder %s215, %s216
      %p228 = scmp.eq.s32.totalorder %s30, 1
      %p229 = por %p227, %p228
      %p231 = scmp.ne.s32.totalorder %s216, %s230
      %p232 = scmp.eq.s32.totalorder %s30, 0
      %p233 = por %p231, %p232
      %s235 = sadd.s32 %s234, 1
      %p238 = scmp.eq.s32.totalorder %s24, 1
      %p239 = scmp.ne.s32.totalorder %s234, %s236
      %p240 = scmp.eq.s32.totalorder %s24, 0
      %p241 = por %p239, %p240
      %p242 = scmp.ne.s32.totalorder %s234, %s236
      %p243 = scmp.eq.s32.totalorder %s29, 1
      %p244 = por %p242, %p243
      %p245 = scmp.ne.s32.totalorder %s236, %s237
      %p246 = scmp.eq.s32.totalorder %s29, 0
      %p247 = por %p245, %p246
      %p248 = scmp.ne.s32.totalorder %s236, %s237
      %p249 = scmp.eq.s32.totalorder %s30, 1
      %p250 = por %p248, %p249
      %p252 = scmp.ne.s32.totalorder %s237, %s251
      %p253 = scmp.eq.s32.totalorder %s30, 0
      %p254 = por %p252, %p253
      %s255 = ssub.s32 %s31, %s43
      %p256 = scmp.eq.s32.totalorder %s255, 0
      %s258 = sadd.s32 %s257, 1
      %s259 = scalar_select %p256, %s257, %s258
      %p262 = pneg %p256
      %p263 = scmp.eq.s32.totalorder %s24, 1
      %p264 = por %p262, %p263
      %p265 = scmp.ne.s32.totalorder %s257, %s260
      %p266 = scmp.eq.s32.totalorder %s24, 0
      %p267 = por %p265, %p266
      %p268 = scmp.ne.s32.totalorder %s257, %s260
      %p269 = scmp.eq.s32.totalorder %s29, 1
      %p270 = por %p268, %p269
      %p271 = scmp.ne.s32.totalorder %s260, %s261
      %p272 = scmp.eq.s32.totalorder %s29, 0
      %p273 = por %p271, %p272
      %p274 = scmp.ne.s32.totalorder %s260, %s261
      %p275 = scmp.eq.s32.totalorder %s30, 1
      %p276 = por %p274, %p275
      %p278 = scmp.ne.s32.totalorder %s261, %s277
      %p279 = scmp.eq.s32.totalorder %s30, 0
      %p280 = por %p278, %p279
      %p281 = scmp.le.s32.totalorder 1, %s24
      %p282 = scmp.lt.s32.totalorder %s24, 3
      %p283 = pnand %p281, %p282
      %p284 = pneg %p283
      // Predicated region
      $region9: #{tpu_custom_call.1} parent=5 // pred_check
        _
      $region10: #{tpu_custom_call.1} parent=5 // pred_check_branch
        %286 = sbr.rel (%p283) target = $region12
      $region11: #{tpu_custom_call.1} parent=5 // pred_region
        %s287 = ssub.s32 %s24, 1
        // Predicated region
        $region13: #{tpu_custom_call.1} parent=11 // pred_check
          %p288 = pneg %p121
        $region14: #{tpu_custom_call.1} parent=11 // pred_check_branch
          %290 = sbr.rel (%p288) target = $region16
        $region15: #{tpu_custom_call.1} parent=11 // pred_region
          %292 = vsyncadd [#allocation8], 0
          %s293 = sshll.u32 %s2, 4
          %s294 = int_to_ptr.hbm [resolvable:$true] %s293
          %s295 = sshll.u32 [#allocation9], 4
          %s296 = int_to_ptr.vmem [resolvable:$true] %s295
          %301 = dma.hbm_to_vmem [thread:$0]  %s294, 3072, %s296, [#allocation8], 192, 192, 12
        $region16: #{tpu_custom_call.1} parent=11 // pred_fallthru
          _
        // Predicated region
        $region17: #{tpu_custom_call.1} parent=11 // pred_check
          %p302 = pneg %p142
        $region18: #{tpu_custom_call.1} parent=11 // pred_check_branch
          %304 = sbr.rel (%p302) target = $region20
        $region19: #{tpu_custom_call.1} parent=11 // pred_region
          %306 = vsyncadd [#allocation11], 0
          %s307 = sshll.u32 %s3, 4
          %s308 = int_to_ptr.hbm [resolvable:$true] %s307
          %s309 = sshll.u32 [#allocation10], 4
          %s310 = int_to_ptr.vmem [resolvable:$true] %s309
          %315 = dma.hbm_to_vmem [thread:$0]  %s308, 3072, %s310, [#allocation11], 192, 192, 12
        $region20: #{tpu_custom_call.1} parent=11 // pred_fallthru
          _
        // Predicated region
        $region21: #{tpu_custom_call.1} parent=11 // pred_check
          %p316 = pneg %p163
        $region22: #{tpu_custom_call.1} parent=11 // pred_check_branch
          %318 = sbr.rel (%p316) target = $region24
        $region23: #{tpu_custom_call.1} parent=11 // pred_region
          _
        $region24: #{tpu_custom_call.1} parent=11 // pred_fallthru
          _
        // Predicated region
        $region25: #{tpu_custom_call.1} parent=11 // pred_check
          %p319 = pneg %p184
        $region26: #{tpu_custom_call.1} parent=11 // pred_check_branch
          %321 = sbr.rel (%p319) target = $region28
        $region27: #{tpu_custom_call.1} parent=11 // pred_region
          %323 = vsyncadd [#allocation11], 0
          %s324 = sshll.u32 %s5, 4
          %s325 = int_to_ptr.hbm [resolvable:$true] %s324
          %s326 = sshll.u32 [#allocation12], 4
          %s327 = int_to_ptr.vmem [resolvable:$true] %s326
          %332 = dma.hbm_to_vmem [thread:$0]  %s325, 1536, %s327, [#allocation11], 192, 192, 12
        $region28: #{tpu_custom_call.1} parent=11 // pred_fallthru
          _
        // Predicated region
        $region29: #{tpu_custom_call.1} parent=11 // pred_check
          %p333 = pneg %p205
        $region30: #{tpu_custom_call.1} parent=11 // pred_check_branch
          %335 = sbr.rel (%p333) target = $region32
        $region31: #{tpu_custom_call.1} parent=11 // pred_region
          _
        $region32: #{tpu_custom_call.1} parent=11 // pred_fallthru
          _
        // Predicated region
        $region33: #{tpu_custom_call.1} parent=11 // pred_check
          %p336 = pneg %p226
        $region34: #{tpu_custom_call.1} parent=11 // pred_check_branch
          %338 = sbr.rel (%p336) target = $region36
        $region35: #{tpu_custom_call.1} parent=11 // pred_region
          %340 = vsyncadd [#allocation14], 0
          %s341 = sshll.u32 %s7, 4
          %s342 = int_to_ptr.hbm [resolvable:$true] %s341
          %s343 = sshll.u32 [#allocation13], 4
          %s344 = int_to_ptr.vmem [resolvable:$true] %s343
          %349 = dma.hbm_to_vmem [thread:$0]  %s342, 512, %s344, [#allocation14], 64, 64, 4
        $region36: #{tpu_custom_call.1} parent=11 // pred_fallthru
          _
        // Predicated region
        $region37: #{tpu_custom_call.1} parent=11 // pred_check
          %p350 = pneg %p247
        $region38: #{tpu_custom_call.1} parent=11 // pred_check_branch
          %352 = sbr.rel (%p350) target = $region40
        $region39: #{tpu_custom_call.1} parent=11 // pred_region
          _
        $region40: #{tpu_custom_call.1} parent=11 // pred_fallthru
          _
      $region12: #{tpu_custom_call.1} parent=5 // pred_fallthru
        _
      %p353 = scmp.lt.s32.totalorder %s24, 2
      // Predicated region
      $region41: #{tpu_custom_call.1} parent=5 // pred_check
        %p354 = pneg %p353
      $region42: #{tpu_custom_call.1} parent=5 // pred_check_branch
        %356 = sbr.rel (%p354) target = $region44
      $region43: #{tpu_custom_call.1} parent=5 // pred_region
        // Predicated region
        $region45: #{tpu_custom_call.1} parent=43 // pred_check
          %p357 = pneg %p62
        $region46: #{tpu_custom_call.1} parent=43 // pred_check_branch
          %359 = sbr.rel (%p357) target = $region48
        $region47: #{tpu_custom_call.1} parent=43 // pred_region
          %s360 = sand.u32 %s52, 1
          %s361 = scalar_lea.sflag [#allocation5], %s360
          %s362 = sand.u32 %s52, 1
          %s363 = smul.addr %s362, 32
          %s364 = scalar_lea.vmem [#allocation4], %s363
          %p365 = scmp.lt.s32.totalorder %s32, 0
          %s366 = scalar_select %p365, %s32, 0
          %s367 = smul.u32 8, %s366
          %369 = vsyncadd %s361, 0
          %s370 = smul.addr %s31, 8
          %s371 = sadd.s32 %s367, %s370
          %s372 = smul.addr %s371, 4
          %s373 = scalar_lea.hbm %s0, %s372
          %s374 = sshll.u32 %s373, 4
          %s375 = int_to_ptr.hbm [resolvable:$true] %s374
          %s376 = sshll.u32 %s364, 4
          %s377 = int_to_ptr.vmem [resolvable:$true] %s376
          %382 = dma.hbm_to_vmem [thread:$0]  %s375, 512, %s377, %s361, 64, 64, 4
        $region48: #{tpu_custom_call.1} parent=43 // pred_fallthru
          _
        // Predicated region
        $region49: #{tpu_custom_call.1} parent=43 // pred_check
          %p383 = pneg %p94
        $region50: #{tpu_custom_call.1} parent=43 // pred_check_branch
          %385 = sbr.rel (%p383) target = $region52
        $region51: #{tpu_custom_call.1} parent=43 // pred_region
          %s386 = sand.u32 %s24, 1
          %s387 = scalar_lea.sflag [#allocation8], %s386
          %s388 = sand.u32 %s84, 1
          %s389 = smul.addr %s388, 32
          %s390 = scalar_lea.vmem [#allocation7], %s389
          %p391 = scmp.lt.s32.totalorder %s32, 0
          %s392 = scalar_select %p391, %s32, 0
          %s393 = smul.u32 8, %s392
          %395 = vsyncadd %s387, 0
          %s396 = smul.addr %s31, 8
          %s397 = sadd.s32 %s393, %s396
          %s398 = smul.addr %s397, 4
          %s399 = scalar_lea.hbm %s1, %s398
          %s400 = sshll.u32 %s399, 4
          %s401 = int_to_ptr.hbm [resolvable:$true] %s400
          %s402 = sshll.u32 %s390, 4
          %s403 = int_to_ptr.vmem [resolvable:$true] %s402
          %408 = dma.hbm_to_vmem [thread:$0]  %s401, 512, %s403, %s387, 64, 64, 4
        $region52: #{tpu_custom_call.1} parent=43 // pred_fallthru
          _
      $region44: #{tpu_custom_call.1} parent=5 // pred_fallthru
        _
      %p409 = scmp.le.s32.totalorder 1, %s24
      %p410 = scmp.lt.s32.totalorder %s24, 3
      %p411 = pnand %p409, %p410
      %p412 = pneg %p411
      // Predicated region
      $region53: #{tpu_custom_call.1} parent=5 // pred_check
        _
      $region54: #{tpu_custom_call.1} parent=5 // pred_check_branch
        %414 = sbr.rel (%p411) target = $region56
      $region55: #{tpu_custom_call.1} parent=5 // pred_region
        %s415 = ssub.s32 %s24, 1
        %s416 = sand.u32 %s55, 1
        %s417 = scalar_lea.sflag [#allocation5], %s416
        %s418 = sand.u32 %s55, 1
        %s419 = smul.addr %s418, 32
        %s420 = scalar_lea.vmem [#allocation4], %s419
        // Predicated region
        $region57: #{tpu_custom_call.1} parent=55 // pred_check
          %p421 = pneg %p68
        $region58: #{tpu_custom_call.1} parent=55 // pred_check_branch
          %423 = sbr.rel (%p421) target = $region60
        $region59: #{tpu_custom_call.1} parent=55 // pred_region
          %425 = dma.done %s417, 512
        $region60: #{tpu_custom_call.1} parent=55 // pred_fallthru
          _
        %s426 = sand.u32 %s29, 1
        %s427 = scalar_lea.sflag [#allocation8], %s426
        %s428 = sand.u32 %s87, 1
        %s429 = smul.addr %s428, 32
        %s430 = scalar_lea.vmem [#allocation7], %s429
        // Predicated region
        $region61: #{tpu_custom_call.1} parent=55 // pred_check
          %p431 = pneg %p100
        $region62: #{tpu_custom_call.1} parent=55 // pred_check_branch
          %433 = sbr.rel (%p431) target = $region64
        $region63: #{tpu_custom_call.1} parent=55 // pred_region
          %435 = dma.done %s427, 512
        $region64: #{tpu_custom_call.1} parent=55 // pred_fallthru
          _
        // Predicated region
        $region65: #{tpu_custom_call.1} parent=55 // pred_check
          %p436 = pneg %p121
        $region66: #{tpu_custom_call.1} parent=55 // pred_check_branch
          %438 = sbr.rel (%p436) target = $region68
        $region67: #{tpu_custom_call.1} parent=55 // pred_region
          %440 = dma.done [#allocation8], 3072
        $region68: #{tpu_custom_call.1} parent=55 // pred_fallthru
          _
        // Predicated region
        $region69: #{tpu_custom_call.1} parent=55 // pred_check
          %p441 = pneg %p142
        $region70: #{tpu_custom_call.1} parent=55 // pred_check_branch
          %443 = sbr.rel (%p441) target = $region72
        $region71: #{tpu_custom_call.1} parent=55 // pred_region
          %445 = dma.done [#allocation11], 3072
        $region72: #{tpu_custom_call.1} parent=55 // pred_fallthru
          _
        // Predicated region
        $region73: #{tpu_custom_call.1} parent=55 // pred_check
          %p446 = pneg %p184
        $region74: #{tpu_custom_call.1} parent=55 // pred_check_branch
          %448 = sbr.rel (%p446) target = $region76
        $region75: #{tpu_custom_call.1} parent=55 // pred_region
          %450 = dma.done [#allocation11], 1536
        $region76: #{tpu_custom_call.1} parent=55 // pred_fallthru
          _
        // Predicated region
        $region77: #{tpu_custom_call.1} parent=55 // pred_check
          %p451 = pneg %p226
        $region78: #{tpu_custom_call.1} parent=55 // pred_check_branch
          %453 = sbr.rel (%p451) target = $region80
        $region79: #{tpu_custom_call.1} parent=55 // pred_region
          %455 = dma.done [#allocation14], 512
        $region80: #{tpu_custom_call.1} parent=55 // pred_fallthru
          _
        %s456 = sand.u32 %s55, 1
        %s457 = scalar_lea.sflag [#allocation5], %s456
        %s458 = sand.u32 %s55, 1
        %s459 = smul.addr %s458, 32
        %s460 = scalar_lea.vmem [#allocation4], %s459
        %p461 = pneg %p68
        %p462 = pneg %p65
        %s463 = sand.u32 %s29, 1
        %s464 = scalar_lea.sflag [#allocation8], %s463
        %s465 = sand.u32 %s87, 1
        %s466 = smul.addr %s465, 32
        %s467 = scalar_lea.vmem [#allocation7], %s466
        %p468 = pneg %p100
        %p469 = pneg %p97
        %p470 = pneg %p121
        %p471 = pneg %p118
        %p472 = pneg %p142
        %p473 = pneg %p139
        %p474 = pneg %p163
        %p475 = pneg %p160
        %p476 = pneg %p184
        %p477 = pneg %p181
        %p478 = pneg %p205
        %p479 = pneg %p202
        %p480 = pneg %p226
        %p481 = pneg %p223
        %p482 = pneg %p247
        %p483 = pneg %p244
        %p484 = pneg %p273
        %p485 = pneg %p270
        %p486 = scmp.lt.s32.totalorder %s34, 0
        %s487 = scalar_select %p486, %s34, 0
        %s488 = smul.u32 8, %s487
        %p489 = scmp.lt.s32.totalorder %s34, 0
        %s490 = scalar_select %p489, %s34, 0
        %s491 = smul.u32 8, %s490
        %p493 = scmp.eq.s32.totalorder %s34, 0
        // Predicated region
        $region81: #{tpu_custom_call.1} parent=55 // pred_check
          %p494 = pneg %p493
        $region82: #{tpu_custom_call.1} parent=55 // pred_check_branch
          %496 = sbr.rel (%p494) target = $region84
        $region83: #{tpu_custom_call.1} parent=55 // pred_region
          %vm497 = vcmask 523264
          %498 = vst.msk [vmem:[#allocation2] sm:$0xff] %vm497, 0.0
        $region84: #{tpu_custom_call.1} parent=55 // pred_fallthru
          _
        %p499 = scmp.lt.s32.totalorder %s34, 1
        // Predicated region
        $region85: #{tpu_custom_call.1} parent=55 // pred_check
          %p500 = pneg %p499
        $region86: #{tpu_custom_call.1} parent=55 // pred_check_branch
          %502 = sbr.rel (%p500) target = $region88
        $region87: #{tpu_custom_call.1} parent=55 // pred_region
          %s503 = sand.u32 %s34, 1
          %s504 = smul.u32 %s503, 64
          %v505 = vld [vmem:[%s420] sm:$0xf]
          %v506 = vld [vmem:[%s420 + $0x4] sm:$0xf]
          %v507 = vld [vmem:[%s420 + $0x8] sm:$0xf]
          %v508 = vld [vmem:[%s420 + $0xc] sm:$0xf]
          %v509 = vld [vmem:[%s420 + $0x10] sm:$0xf]
          %v510 = vld [vmem:[%s420 + $0x14] sm:$0xf]
          %v511 = vld [vmem:[%s420 + $0x18] sm:$0xf]
          %v512 = vld [vmem:[%s420 + $0x1c] sm:$0xf]
          %v513 = vld [vmem:[%s430] sm:$0xf]
          %v514 = vld [vmem:[%s430 + $0x4] sm:$0xf]
          %v515 = vld [vmem:[%s430 + $0x8] sm:$0xf]
          %v516 = vld [vmem:[%s430 + $0xc] sm:$0xf]
          %v517 = vld [vmem:[%s430 + $0x10] sm:$0xf]
          %v518 = vld [vmem:[%s430 + $0x14] sm:$0xf]
          %v519 = vld [vmem:[%s430 + $0x18] sm:$0xf]
          %v520 = vld [vmem:[%s430 + $0x1c] sm:$0xf]
          %v521 = vld [vmem:[#allocation9] sm:$0xff]
          %v522 = vld [vmem:[#allocation9 + $0x8] sm:$0xf]
          %v523 = vld [vmem:[#allocation9 + $0xc] sm:$0xff]
          %v524 = vld [vmem:[#allocation9 + $0x14] sm:$0xf]
          %v525 = vld [vmem:[#allocation9 + $0x18] sm:$0xff]
          %v526 = vld [vmem:[#allocation9 + $0x20] sm:$0xf]
          %v527 = vld [vmem:[#allocation9 + $0x24] sm:$0xff]
          %v528 = vld [vmem:[#allocation9 + $0x2c] sm:$0xf]
          %v529 = vld [vmem:[#allocation9 + $0x30] sm:$0xff]
          %v530 = vld [vmem:[#allocation9 + $0x38] sm:$0xf]
          %v531 = vld [vmem:[#allocation9 + $0x3c] sm:$0xff]
          %v532 = vld [vmem:[#allocation9 + $0x44] sm:$0xf]
          %v533 = vld [vmem:[#allocation9 + $0x48] sm:$0xff]
          %v534 = vld [vmem:[#allocation9 + $0x50] sm:$0xf]
          %v535 = vld [vmem:[#allocation9 + $0x54] sm:$0xff]
          %v536 = vld [vmem:[#allocation9 + $0x5c] sm:$0xf]
          %v537 = vld [vmem:[#allocation9 + $0x60] sm:$0xff]
          %v538 = vld [vmem:[#allocation9 + $0x68] sm:$0xf]
          %v539 = vld [vmem:[#allocation9 + $0x6c] sm:$0xff]
          %v540 = vld [vmem:[#allocation9 + $0x74] sm:$0xf]
          %v541 = vld [vmem:[#allocation9 + $0x78] sm:$0xff]
          %v542 = vld [vmem:[#allocation9 + $0x80] sm:$0xf]
          %v543 = vld [vmem:[#allocation9 + $0x84] sm:$0xff]
          %v544 = vld [vmem:[#allocation9 + $0x8c] sm:$0xf]
          %v545 = vld [vmem:[#allocation9 + $0x90] sm:$0xff]
          %v546 = vld [vmem:[#allocation9 + $0x98] sm:$0xf]
          %v547 = vld [vmem:[#allocation9 + $0x9c] sm:$0xff]
          %v548 = vld [vmem:[#allocation9 + $0xa4] sm:$0xf]
          %v549 = vld [vmem:[#allocation9 + $0xa8] sm:$0xff]
          %v550 = vld [vmem:[#allocation9 + $0xb0] sm:$0xf]
          %v551 = vld [vmem:[#allocation9 + $0xb4] sm:$0xff]
          %v552 = vld [vmem:[#allocation9 + $0xbc] sm:$0xf]
          %v553 = vld [vmem:[#allocation10] sm:$0xff]
          %v554 = vld [vmem:[#allocation10 + $0x8] sm:$0xf]
          %v555 = vld [vmem:[#allocation10 + $0xc] sm:$0xff]
          %v556 = vld [vmem:[#allocation10 + $0x14] sm:$0xf]
          %v557 = vld [vmem:[#allocation10 + $0x18] sm:$0xff]
          %v558 = vld [vmem:[#allocation10 + $0x20] sm:$0xf]
          %v559 = vld [vmem:[#allocation10 + $0x24] sm:$0xff]
          %v560 = vld [vmem:[#allocation10 + $0x2c] sm:$0xf]
          %v561 = vld [vmem:[#allocation10 + $0x30] sm:$0xff]
          %v562 = vld [vmem:[#allocation10 + $0x38] sm:$0xf]
          %v563 = vld [vmem:[#allocation10 + $0x3c] sm:$0xff]
          %v564 = vld [vmem:[#allocation10 + $0x44] sm:$0xf]
          %v565 = vld [vmem:[#allocation10 + $0x48] sm:$0xff]
          %v566 = vld [vmem:[#allocation10 + $0x50] sm:$0xf]
          %v567 = vld [vmem:[#allocation10 + $0x54] sm:$0xff]
          %v568 = vld [vmem:[#allocation10 + $0x5c] sm:$0xf]
          %v569 = vld [vmem:[#allocation10 + $0x60] sm:$0xff]
          %v570 = vld [vmem:[#allocation10 + $0x68] sm:$0xf]
          %v571 = vld [vmem:[#allocation10 + $0x6c] sm:$0xff]
          %v572 = vld [vmem:[#allocation10 + $0x74] sm:$0xf]
          %v573 = vld [vmem:[#allocation10 + $0x78] sm:$0xff]
          %v574 = vld [vmem:[#allocation10 + $0x80] sm:$0xf]
          %v575 = vld [vmem:[#allocation10 + $0x84] sm:$0xff]
          %v576 = vld [vmem:[#allocation10 + $0x8c] sm:$0xf]
          %v577 = vld [vmem:[#allocation10 + $0x90] sm:$0xff]
          %v578 = vld [vmem:[#allocation10 + $0x98] sm:$0xf]
          %v579 = vld [vmem:[#allocation10 + $0x9c] sm:$0xff]
          %v580 = vld [vmem:[#allocation10 + $0xa4] sm:$0xf]
          %v581 = vld [vmem:[#allocation10 + $0xa8] sm:$0xff]
          %v582 = vld [vmem:[#allocation10 + $0xb0] sm:$0xf]
          %v583 = vld [vmem:[#allocation10 + $0xb4] sm:$0xff]
          %v584 = vld [vmem:[#allocation10 + $0xbc] sm:$0xf]
          %v593 = vunpack.c.l.b16 %v513
          %v594 = vunpack.c.l.b16 %v514
          %v595 = vunpack.c.l.b16 %v515
          %v596 = vunpack.c.l.b16 %v516
          %v597 = vunpack.c.l.b16 %v517
          %v598 = vunpack.c.l.b16 %v518
          %v599 = vunpack.c.l.b16 %v519
          %v600 = vunpack.c.l.b16 %v520
          %v601 = vpack.c.b16 %v594, %v593
          %v602 = vpack.c.b16 %v596, %v595
          %v603 = vpack.c.b16 %v598, %v597
          %v604 = vpack.c.b16 %v600, %v599
          %v641 = vunpack.c.l.b16 %v553
          %v642 = vunpack.c.h.b16 %v553
          %v643 = vunpack.c.l.b16 %v554
          %v644 = vunpack.c.l.b16 %v555
          %v645 = vunpack.c.h.b16 %v555
          %v646 = vunpack.c.l.b16 %v556
          %v647 = vunpack.c.l.b16 %v557
          %v648 = vunpack.c.h.b16 %v557
          %v649 = vunpack.c.l.b16 %v558
          %v650 = vunpack.c.l.b16 %v559
          %v651 = vunpack.c.h.b16 %v559
          %v652 = vunpack.c.l.b16 %v560
          %v653 = vunpack.c.l.b16 %v561
          %v654 = vunpack.c.h.b16 %v561
          %v655 = vunpack.c.l.b16 %v562
          %v656 = vunpack.c.l.b16 %v563
          %v657 = vunpack.c.h.b16 %v563
          %v658 = vunpack.c.l.b16 %v564
          %v659 = vunpack.c.l.b16 %v565
          %v660 = vunpack.c.h.b16 %v565
          %v661 = vunpack.c.l.b16 %v566
          %v662 = vunpack.c.l.b16 %v567
          %v663 = vunpack.c.h.b16 %v567
          %v664 = vunpack.c.l.b16 %v568
          %v665 = vunpack.c.l.b16 %v569
          %v666 = vunpack.c.h.b16 %v569
          %v667 = vunpack.c.l.b16 %v570
          %v668 = vunpack.c.l.b16 %v571
          %v669 = vunpack.c.h.b16 %v571
          %v670 = vunpack.c.l.b16 %v572
          %v671 = vunpack.c.l.b16 %v573
          %v672 = vunpack.c.h.b16 %v573
          %v673 = vunpack.c.l.b16 %v574
          %v674 = vunpack.c.l.b16 %v575
          %v675 = vunpack.c.h.b16 %v575
          %v676 = vunpack.c.l.b16 %v576
          %v677 = vunpack.c.l.b16 %v577
          %v678 = vunpack.c.h.b16 %v577
          %v679 = vunpack.c.l.b16 %v578
          %v680 = vunpack.c.l.b16 %v579
          %v681 = vunpack.c.h.b16 %v579
          %v682 = vunpack.c.l.b16 %v580
          %v683 = vunpack.c.l.b16 %v581
          %v684 = vunpack.c.h.b16 %v581
          %v685 = vunpack.c.l.b16 %v582
          %v686 = vunpack.c.l.b16 %v583
          %v687 = vunpack.c.h.b16 %v583
          %v688 = vunpack.c.l.b16 %v584
          %v689 = vpack.c.b16 %v644, %v641
          %v690 = vpack.c.b16 %v645, %v642
          %v691 = vpack.c.b16 %v646, %v643
          %v692 = vpack.c.b16 %v650, %v647
          %v693 = vpack.c.b16 %v651, %v648
          %v694 = vpack.c.b16 %v652, %v649
          %v695 = vpack.c.b16 %v656, %v653
          %v696 = vpack.c.b16 %v657, %v654
          %v697 = vpack.c.b16 %v658, %v655
          %v698 = vpack.c.b16 %v662, %v659
          %v699 = vpack.c.b16 %v663, %v660
          %v700 = vpack.c.b16 %v664, %v661
          %v701 = vpack.c.b16 %v668, %v665
          %v702 = vpack.c.b16 %v669, %v666
          %v703 = vpack.c.b16 %v670, %v667
          %v704 = vpack.c.b16 %v674, %v671
          %v705 = vpack.c.b16 %v675, %v672
          %v706 = vpack.c.b16 %v676, %v673
          %v707 = vpack.c.b16 %v680, %v677
          %v708 = vpack.c.b16 %v681, %v678
          %v709 = vpack.c.b16 %v682, %v679
          %v710 = vpack.c.b16 %v686, %v683
          %v711 = vpack.c.b16 %v687, %v684
          %v712 = vpack.c.b16 %v688, %v685
          %737 = vmatpush.bf16.msra.mxu0 %v710
          %738 = vmatpush.bf16.msra.mxu0 %v707
          %739 = vmatpush.bf16.msra.mxu0 %v704
          %740 = vmatpush.bf16.msra.mxu0 %v701
          %741 = vmatpush.bf16.msra.mxu0 %v698
          %742 = vmatpush.bf16.msra.mxu0 %v695
          %743 = vmatpush.bf16.msra.mxu0 %v692
          %744 = vmatpush.bf16.msra.mxu0 %v689
          %745 = vmatmul.bf16.gmra.mxu0 %v601
          %v746 = vpop.f32.mrf.mxu0
          %v747 = vadd.f32 0.0, %v746
          %v748 = vpop.f32.mrf.mxu0
          %v749 = vadd.f32 0.0, %v748
          %750 = vmatmul.bf16.gmra.mxu0 %v602
          %v751 = vpop.f32.mrf.mxu0
          %v752 = vadd.f32 0.0, %v751
          %v753 = vpop.f32.mrf.mxu0
          %v754 = vadd.f32 0.0, %v753
          %755 = vmatmul.bf16.gmra.mxu0 %v603
          %v756 = vpop.f32.mrf.mxu0
          %v757 = vadd.f32 0.0, %v756
          %v758 = vpop.f32.mrf.mxu0
          %v759 = vadd.f32 0.0, %v758
          %760 = vmatmul.bf16.gmra.mxu0 %v604
          %v761 = vpop.f32.mrf.mxu0
          %v762 = vadd.f32 0.0, %v761
          %v763 = vpop.f32.mrf.mxu0
          %v764 = vadd.f32 0.0, %v763
          %765 = vdwg.mxu0
          %766 = vmatpush.bf16.msra.mxu0 %v711
          %767 = vmatpush.bf16.msra.mxu0 %v708
          %768 = vmatpush.bf16.msra.mxu0 %v705
          %769 = vmatpush.bf16.msra.mxu0 %v702
          %770 = vmatpush.bf16.msra.mxu0 %v699
          %771 = vmatpush.bf16.msra.mxu0 %v696
          %772 = vmatpush.bf16.msra.mxu0 %v693
          %773 = vmatpush.bf16.msra.mxu0 %v690
          %774 = vmatmul.bf16.gmra.mxu0 %v601
          %v775 = vpop.f32.mrf.mxu0
          %v776 = vadd.f32 0.0, %v775
          %v777 = vpop.f32.mrf.mxu0
          %v778 = vadd.f32 0.0, %v777
          %779 = vmatmul.bf16.gmra.mxu0 %v602
          %v780 = vpop.f32.mrf.mxu0
          %v781 = vadd.f32 0.0, %v780
          %v782 = vpop.f32.mrf.mxu0
          %v783 = vadd.f32 0.0, %v782
          %784 = vmatmul.bf16.gmra.mxu0 %v603
          %v785 = vpop.f32.mrf.mxu0
          %v786 = vadd.f32 0.0, %v785
          %v787 = vpop.f32.mrf.mxu0
          %v788 = vadd.f32 0.0, %v787
          %789 = vmatmul.bf16.gmra.mxu0 %v604
          %v790 = vpop.f32.mrf.mxu0
          %v791 = vadd.f32 0.0, %v790
          %v792 = vpop.f32.mrf.mxu0
          %v793 = vadd.f32 0.0, %v792
          %794 = vdwg.mxu0
          %795 = vmatpush.bf16.msra.mxu0 %v712
          %796 = vmatpush.bf16.msra.mxu0 %v709
          %797 = vmatpush.bf16.msra.mxu0 %v706
          %798 = vmatpush.bf16.msra.mxu0 %v703
          %799 = vmatpush.bf16.msra.mxu0 %v700
          %800 = vmatpush.bf16.msra.mxu0 %v697
          %801 = vmatpush.bf16.msra.mxu0 %v694
          %802 = vmatpush.bf16.msra.mxu0 %v691
          %803 = vmatmul.bf16.gmra.mxu0 %v601
          %v804 = vpop.f32.mrf.mxu0
          %v805 = vadd.f32 0.0, %v804
          %v806 = vpop.f32.mrf.mxu0
          %v807 = vadd.f32 0.0, %v806
          %808 = vmatmul.bf16.gmra.mxu0 %v602
          %v809 = vpop.f32.mrf.mxu0
          %v810 = vadd.f32 0.0, %v809
          %v811 = vpop.f32.mrf.mxu0
          %v812 = vadd.f32 0.0, %v811
          %813 = vmatmul.bf16.gmra.mxu0 %v603
          %v814 = vpop.f32.mrf.mxu0
          %v815 = vadd.f32 0.0, %v814
          %v816 = vpop.f32.mrf.mxu0
          %v817 = vadd.f32 0.0, %v816
          %818 = vmatmul.bf16.gmra.mxu0 %v604
          %v819 = vpop.f32.mrf.mxu0
          %v820 = vadd.f32 0.0, %v819
          %v821 = vpop.f32.mrf.mxu0
          %v822 = vadd.f32 0.0, %v821
          %823 = vdwg.mxu0
          %v832 = vunpack.c.l.b16 %v505
          %v833 = vunpack.c.l.b16 %v506
          %v834 = vunpack.c.l.b16 %v507
          %v835 = vunpack.c.l.b16 %v508
          %v836 = vunpack.c.l.b16 %v509
          %v837 = vunpack.c.l.b16 %v510
          %v838 = vunpack.c.l.b16 %v511
          %v839 = vunpack.c.l.b16 %v512
          %v840 = vpack.c.b16 %v833, %v832
          %v841 = vpack.c.b16 %v835, %v834
          %v842 = vpack.c.b16 %v837, %v836
          %v843 = vpack.c.b16 %v839, %v838
          %v880 = vunpack.c.l.b16 %v521
          %v881 = vunpack.c.h.b16 %v521
          %v882 = vunpack.c.l.b16 %v522
          %v883 = vunpack.c.l.b16 %v523
          %v884 = vunpack.c.h.b16 %v523
          %v885 = vunpack.c.l.b16 %v524
          %v886 = vunpack.c.l.b16 %v525
          %v887 = vunpack.c.h.b16 %v525
          %v888 = vunpack.c.l.b16 %v526
          %v889 = vunpack.c.l.b16 %v527
          %v890 = vunpack.c.h.b16 %v527
          %v891 = vunpack.c.l.b16 %v528
          %v892 = vunpack.c.l.b16 %v529
          %v893 = vunpack.c.h.b16 %v529
          %v894 = vunpack.c.l.b16 %v530
          %v895 = vunpack.c.l.b16 %v531
          %v896 = vunpack.c.h.b16 %v531
          %v897 = vunpack.c.l.b16 %v532
          %v898 = vunpack.c.l.b16 %v533
          %v899 = vunpack.c.h.b16 %v533
          %v900 = vunpack.c.l.b16 %v534
          %v901 = vunpack.c.l.b16 %v535
          %v902 = vunpack.c.h.b16 %v535
          %v903 = vunpack.c.l.b16 %v536
          %v904 = vunpack.c.l.b16 %v537
          %v905 = vunpack.c.h.b16 %v537
          %v906 = vunpack.c.l.b16 %v538
          %v907 = vunpack.c.l.b16 %v539
          %v908 = vunpack.c.h.b16 %v539
          %v909 = vunpack.c.l.b16 %v540
          %v910 = vunpack.c.l.b16 %v541
          %v911 = vunpack.c.h.b16 %v541
          %v912 = vunpack.c.l.b16 %v542
          %v913 = vunpack.c.l.b16 %v543
          %v914 = vunpack.c.h.b16 %v543
          %v915 = vunpack.c.l.b16 %v544
          %v916 = vunpack.c.l.b16 %v545
          %v917 = vunpack.c.h.b16 %v545
          %v918 = vunpack.c.l.b16 %v546
          %v919 = vunpack.c.l.b16 %v547
          %v920 = vunpack.c.h.b16 %v547
          %v921 = vunpack.c.l.b16 %v548
          %v922 = vunpack.c.l.b16 %v549
          %v923 = vunpack.c.h.b16 %v549
          %v924 = vunpack.c.l.b16 %v550
          %v925 = vunpack.c.l.b16 %v551
          %v926 = vunpack.c.h.b16 %v551
          %v927 = vunpack.c.l.b16 %v552
          %v928 = vpack.c.b16 %v883, %v880
          %v929 = vpack.c.b16 %v884, %v881
          %v930 = vpack.c.b16 %v885, %v882
          %v931 = vpack.c.b16 %v889, %v886
          %v932 = vpack.c.b16 %v890, %v887
          %v933 = vpack.c.b16 %v891, %v888
          %v934 = vpack.c.b16 %v895, %v892
          %v935 = vpack.c.b16 %v896, %v893
          %v936 = vpack.c.b16 %v897, %v894
          %v937 = vpack.c.b16 %v901, %v898
          %v938 = vpack.c.b16 %v902, %v899
          %v939 = vpack.c.b16 %v903, %v900
          %v940 = vpack.c.b16 %v907, %v904
          %v941 = vpack.c.b16 %v908, %v905
          %v942 = vpack.c.b16 %v909, %v906
          %v943 = vpack.c.b16 %v913, %v910
          %v944 = vpack.c.b16 %v914, %v911
          %v945 = vpack.c.b16 %v915, %v912
          %v946 = vpack.c.b16 %v919, %v916
          %v947 = vpack.c.b16 %v920, %v917
          %v948 = vpack.c.b16 %v921, %v918
          %v949 = vpack.c.b16 %v925, %v922
          %v950 = vpack.c.b16 %v926, %v923
          %v951 = vpack.c.b16 %v927, %v924
          %976 = vmatpush.bf16.msra.mxu0 %v949
          %977 = vmatpush.bf16.msra.mxu0 %v946
          %978 = vmatpush.bf16.msra.mxu0 %v943
          %979 = vmatpush.bf16.msra.mxu0 %v940
          %980 = vmatpush.bf16.msra.mxu0 %v937
          %981 = vmatpush.bf16.msra.mxu0 %v934
          %982 = vmatpush.bf16.msra.mxu0 %v931
          %983 = vmatpush.bf16.msra.mxu0 %v928
          %984 = vmatmul.bf16.gmra.mxu0 %v840
          %v985 = vpop.f32.mrf.mxu0
          %v986 = vadd.f32 %v747, %v985
          %v987 = vpop.f32.mrf.mxu0
          %v988 = vadd.f32 %v749, %v987
          %989 = vmatmul.bf16.gmra.mxu0 %v841
          %v990 = vpop.f32.mrf.mxu0
          %v991 = vadd.f32 %v752, %v990
          %v992 = vpop.f32.mrf.mxu0
          %v993 = vadd.f32 %v754, %v992
          %994 = vmatmul.bf16.gmra.mxu0 %v842
          %v995 = vpop.f32.mrf.mxu0
          %v996 = vadd.f32 %v757, %v995
          %v997 = vpop.f32.mrf.mxu0
          %v998 = vadd.f32 %v759, %v997
          %999 = vmatmul.bf16.gmra.mxu0 %v843
          %v1000 = vpop.f32.mrf.mxu0
          %v1001 = vadd.f32 %v762, %v1000
          %v1002 = vpop.f32.mrf.mxu0
          %v1003 = vadd.f32 %v764, %v1002
          %1004 = vdwg.mxu0
          %1005 = vmatpush.bf16.msra.mxu0 %v950
          %1006 = vmatpush.bf16.msra.mxu0 %v947
          %1007 = vmatpush.bf16.msra.mxu0 %v944
          %1008 = vmatpush.bf16.msra.mxu0 %v941
          %1009 = vmatpush.bf16.msra.mxu0 %v938
          %1010 = vmatpush.bf16.msra.mxu0 %v935
          %1011 = vmatpush.bf16.msra.mxu0 %v932
          %1012 = vmatpush.bf16.msra.mxu0 %v929
          %1013 = vmatmul.bf16.gmra.mxu0 %v840
          %v1014 = vpop.f32.mrf.mxu0
          %v1015 = vadd.f32 %v776, %v1014
          %v1016 = vpop.f32.mrf.mxu0
          %v1017 = vadd.f32 %v778, %v1016
          %1018 = vmatmul.bf16.gmra.mxu0 %v841
          %v1019 = vpop.f32.mrf.mxu0
          %v1020 = vadd.f32 %v781, %v1019
          %v1021 = vpop.f32.mrf.mxu0
          %v1022 = vadd.f32 %v783, %v1021
          %1023 = vmatmul.bf16.gmra.mxu0 %v842
          %v1024 = vpop.f32.mrf.mxu0
          %v1025 = vadd.f32 %v786, %v1024
          %v1026 = vpop.f32.mrf.mxu0
          %v1027 = vadd.f32 %v788, %v1026
          %1028 = vmatmul.bf16.gmra.mxu0 %v843
          %v1029 = vpop.f32.mrf.mxu0
          %v1030 = vadd.f32 %v791, %v1029
          %v1031 = vpop.f32.mrf.mxu0
          %v1032 = vadd.f32 %v793, %v1031
          %1033 = vdwg.mxu0
          %1034 = vmatpush.bf16.msra.mxu0 %v951
          %1035 = vmatpush.bf16.msra.mxu0 %v948
          %1036 = vmatpush.bf16.msra.mxu0 %v945
          %1037 = vmatpush.bf16.msra.mxu0 %v942
          %1038 = vmatpush.bf16.msra.mxu0 %v939
          %1039 = vmatpush.bf16.msra.mxu0 %v936
          %1040 = vmatpush.bf16.msra.mxu0 %v933
          %1041 = vmatpush.bf16.msra.mxu0 %v930
          %1042 = vmatmul.bf16.gmra.mxu0 %v840
          %v1043 = vpop.f32.mrf.mxu0
          %v1044 = vadd.f32 %v805, %v1043
          %v1045 = vpop.f32.mrf.mxu0
          %v1046 = vadd.f32 %v807, %v1045
          %1047 = vmatmul.bf16.gmra.mxu0 %v841
          %v1048 = vpop.f32.mrf.mxu0
          %v1049 = vadd.f32 %v810, %v1048
          %v1050 = vpop.f32.mrf.mxu0
          %v1051 = vadd.f32 %v812, %v1050
          %1052 = vmatmul.bf16.gmra.mxu0 %v842
          %v1053 = vpop.f32.mrf.mxu0
          %v1054 = vadd.f32 %v815, %v1053
          %v1055 = vpop.f32.mrf.mxu0
          %v1056 = vadd.f32 %v817, %v1055
          %1057 = vmatmul.bf16.gmra.mxu0 %v843
          %v1058 = vpop.f32.mrf.mxu0
          %v1059 = vadd.f32 %v820, %v1058
          %v1060 = vpop.f32.mrf.mxu0
          %v1061 = vadd.f32 %v822, %v1060
          %1062 = vdwg.mxu0
          %v1063 = vld [vmem:[%s4] sm:$0x7]
          %v1065 = vperm.slane %v1063, 0
          %v1066 = vperm.slane %v1063, 1
          %v1067 = vperm.slane %v1063, 2
          %v1071 = vadd.f32 %v986, %v1065
          %v1072 = vadd.f32 %v1015, %v1066
          %v1073 = vadd.f32 %v1044, %v1067
          %v1074 = vadd.f32 %v988, %v1065
          %v1075 = vadd.f32 %v1017, %v1066
          %v1076 = vadd.f32 %v1046, %v1067
          %v1077 = vadd.f32 %v991, %v1065
          %v1078 = vadd.f32 %v1020, %v1066
          %v1079 = vadd.f32 %v1049, %v1067
          %v1080 = vadd.f32 %v993, %v1065
          %v1081 = vadd.f32 %v1022, %v1066
          %v1082 = vadd.f32 %v1051, %v1067
          %v1083 = vadd.f32 %v996, %v1065
          %v1084 = vadd.f32 %v1025, %v1066
          %v1085 = vadd.f32 %v1054, %v1067
          %v1086 = vadd.f32 %v998, %v1065
          %v1087 = vadd.f32 %v1027, %v1066
          %v1088 = vadd.f32 %v1056, %v1067
          %v1089 = vadd.f32 %v1001, %v1065
          %v1090 = vadd.f32 %v1030, %v1066
          %v1091 = vadd.f32 %v1059, %v1067
          %v1092 = vadd.f32 %v1003, %v1065
          %v1093 = vadd.f32 %v1032, %v1066
          %v1094 = vadd.f32 %v1061, %v1067
          %s1095 = sshra.s32 %s504, 3
          %s1096 = sand.u32 %s504, 7
          %s1097 = smul.u32 %s1095, 3
          %s1098 = smul.addr %s1097, 8
          %s1099 = scalar_lea.vmem [#allocation3], %s1098
          %1100 = vst [vmem:[%s1099] sm:$0xff] %v1071
          %1101 = vst [vmem:[%s1099 + $0x8] sm:$0xff] %v1072
          %1102 = vst [vmem:[%s1099 + $0x10] sm:$0xff] %v1073
          %1103 = vst [vmem:[%s1099 + $0x18] sm:$0xff] %v1074
          %1104 = vst [vmem:[%s1099 + $0x20] sm:$0xff] %v1075
          %1105 = vst [vmem:[%s1099 + $0x28] sm:$0xff] %v1076
          %1106 = vst [vmem:[%s1099 + $0x30] sm:$0xff] %v1077
          %1107 = vst [vmem:[%s1099 + $0x38] sm:$0xff] %v1078
          %1108 = vst [vmem:[%s1099 + $0x40] sm:$0xff] %v1079
          %1109 = vst [vmem:[%s1099 + $0x48] sm:$0xff] %v1080
          %1110 = vst [vmem:[%s1099 + $0x50] sm:$0xff] %v1081
          %1111 = vst [vmem:[%s1099 + $0x58] sm:$0xff] %v1082
          %1112 = vst [vmem:[%s1099 + $0x60] sm:$0xff] %v1083
          %1113 = vst [vmem:[%s1099 + $0x68] sm:$0xff] %v1084
          %1114 = vst [vmem:[%s1099 + $0x70] sm:$0xff] %v1085
          %1115 = vst [vmem:[%s1099 + $0x78] sm:$0xff] %v1086
          %1116 = vst [vmem:[%s1099 + $0x80] sm:$0xff] %v1087
          %1117 = vst [vmem:[%s1099 + $0x88] sm:$0xff] %v1088
          %1118 = vst [vmem:[%s1099 + $0x90] sm:$0xff] %v1089
          %1119 = vst [vmem:[%s1099 + $0x98] sm:$0xff] %v1090
          %1120 = vst [vmem:[%s1099 + $0xa0] sm:$0xff] %v1091
          %1121 = vst [vmem:[%s1099 + $0xa8] sm:$0xff] %v1092
          %1122 = vst [vmem:[%s1099 + $0xb0] sm:$0xff] %v1093
          %1123 = vst [vmem:[%s1099 + $0xb8] sm:$0xff] %v1094
        $region88: #{tpu_custom_call.1} parent=55 // pred_fallthru
          _
        %p1124 = scmp.ge.s32.totalorder %s34, 1
        // Predicated region
        $region89: #{tpu_custom_call.1} parent=55 // pred_check
          %p1125 = pneg %p1124
        $region90: #{tpu_custom_call.1} parent=55 // pred_check_branch
          %1127 = sbr.rel (%p1125) target = $region92
        $region91: #{tpu_custom_call.1} parent=55 // pred_region
          %s1128 = ssub.s32 %s34, 1
          %s1129 = sand.u32 %s1128, 1
          %s1130 = smul.u32 %s1129, 64
          %v1131 = vld [vmem:[#allocation12] sm:$0xff]
          %v1132 = vld [vmem:[#allocation12 + $0x8] sm:$0xf]
          %v1133 = vld [vmem:[#allocation12 + $0xc] sm:$0xff]
          %v1134 = vld [vmem:[#allocation12 + $0x14] sm:$0xf]
          %v1135 = vld [vmem:[#allocation12 + $0x18] sm:$0xff]
          %v1136 = vld [vmem:[#allocation12 + $0x20] sm:$0xf]
          %v1137 = vld [vmem:[#allocation12 + $0x24] sm:$0xff]
          %v1138 = vld [vmem:[#allocation12 + $0x2c] sm:$0xf]
          %v1139 = vld [vmem:[#allocation12 + $0x30] sm:$0xff]
          %v1140 = vld [vmem:[#allocation12 + $0x38] sm:$0xf]
          %v1141 = vld [vmem:[#allocation12 + $0x3c] sm:$0xff]
          %v1142 = vld [vmem:[#allocation12 + $0x44] sm:$0xf]
          %v1143 = vld [vmem:[#allocation12 + $0x48] sm:$0xff]
          %v1144 = vld [vmem:[#allocation12 + $0x50] sm:$0xf]
          %v1145 = vld [vmem:[#allocation12 + $0x54] sm:$0xff]
          %v1146 = vld [vmem:[#allocation12 + $0x5c] sm:$0xf]
          %v1147 = vld [vmem:[%s6] sm:$0x1]
          %v1148 = vld [vmem:[#allocation2] sm:$0xff]
          %s1149 = sshra.s32 %s1130, 3
          %s1150 = sand.u32 %s1130, 7
          %s1151 = smul.u32 %s1149, 3
          %s1152 = smul.addr %s1151, 8
          %s1153 = scalar_lea.vmem [#allocation3], %s1152
          %v1154 = vld [vmem:[%s1153] sm:$0xff]
          %v1155 = vld [vmem:[%s1153 + $0x8] sm:$0xff]
          %v1156 = vld [vmem:[%s1153 + $0x10] sm:$0xff]
          %v1157 = vpack.c.bf16 %v1148, %v1148
          %v1174 = vunpack.c.l.b16 %v1131
          %v1175 = vunpack.c.h.b16 %v1131
          %v1176 = vunpack.c.l.b16 %v1132
          %v1177 = vunpack.c.l.b16 %v1133
          %v1178 = vunpack.c.h.b16 %v1133
          %v1179 = vunpack.c.l.b16 %v1134
          %v1180 = vunpack.c.l.b16 %v1135
          %v1181 = vunpack.c.h.b16 %v1135
          %v1182 = vunpack.c.l.b16 %v1136
          %v1183 = vunpack.c.l.b16 %v1137
          %v1184 = vunpack.c.h.b16 %v1137
          %v1185 = vunpack.c.l.b16 %v1138
          %v1186 = vunpack.c.l.b16 %v1139
          %v1187 = vunpack.c.h.b16 %v1139
          %v1188 = vunpack.c.l.b16 %v1140
          %v1189 = vunpack.c.l.b16 %v1141
          %v1190 = vunpack.c.h.b16 %v1141
          %v1191 = vunpack.c.l.b16 %v1142
          %v1192 = vunpack.c.l.b16 %v1143
          %v1193 = vunpack.c.h.b16 %v1143
          %v1194 = vunpack.c.l.b16 %v1144
          %v1195 = vunpack.c.l.b16 %v1145
          %v1196 = vunpack.c.h.b16 %v1145
          %v1197 = vunpack.c.l.b16 %v1146
          %v1198 = vpack.c.b16 %v1177, %v1174
          %v1199 = vpack.c.b16 %v1178, %v1175
          %v1200 = vpack.c.b16 %v1179, %v1176
          %v1201 = vpack.c.b16 %v1183, %v1180
          %v1202 = vpack.c.b16 %v1184, %v1181
          %v1203 = vpack.c.b16 %v1185, %v1182
          %v1204 = vpack.c.b16 %v1189, %v1186
          %v1205 = vpack.c.b16 %v1190, %v1187
          %v1206 = vpack.c.b16 %v1191, %v1188
          %v1207 = vpack.c.b16 %v1195, %v1192
          %v1208 = vpack.c.b16 %v1196, %v1193
          %v1209 = vpack.c.b16 %v1197, %v1194
          %vm1222 = vcmask 523264
          %v1224 = vsel %vm1222, %v1157, 0
          %1226 = vmatpush.bf16.msra.mxu0 0
          %1227 = vmatpush.bf16.msra.mxu0 0
          %1228 = vmatpush.bf16.msra.mxu0 0
          %1229 = vmatpush.bf16.msra.mxu0 0
          %1230 = vmatpush.bf16.msra.mxu0 %v1207
          %1231 = vmatpush.bf16.msra.mxu0 %v1204
          %1232 = vmatpush.bf16.msra.mxu0 %v1201
          %1233 = vmatpush.bf16.msra.mxu0 %v1198
          %1234 = vmatmul.bf16.gmra.mxu0 %v1224
          %v1235 = vpop.f32.mrf.mxu0
          %v1236 = vadd.f32 0.0, %v1235
          %v1237 = vpop.f32.mrf.mxu0
          %1238 = vdwg.mxu0
          %1239 = vmatpush.bf16.msra.mxu0 0
          %1240 = vmatpush.bf16.msra.mxu0 0
          %1241 = vmatpush.bf16.msra.mxu0 0
          %1242 = vmatpush.bf16.msra.mxu0 0
          %1243 = vmatpush.bf16.msra.mxu0 %v1208
          %1244 = vmatpush.bf16.msra.mxu0 %v1205
          %1245 = vmatpush.bf16.msra.mxu0 %v1202
          %1246 = vmatpush.bf16.msra.mxu0 %v1199
          %1247 = vmatmul.bf16.gmra.mxu0 %v1224
          %v1248 = vpop.f32.mrf.mxu0
          %v1249 = vadd.f32 0.0, %v1248
          %v1250 = vpop.f32.mrf.mxu0
          %1251 = vdwg.mxu0
          %1252 = vmatpush.bf16.msra.mxu0 0
          %1253 = vmatpush.bf16.msra.mxu0 0
          %1254 = vmatpush.bf16.msra.mxu0 0
          %1255 = vmatpush.bf16.msra.mxu0 0
          %1256 = vmatpush.bf16.msra.mxu0 %v1209
          %1257 = vmatpush.bf16.msra.mxu0 %v1206
          %1258 = vmatpush.bf16.msra.mxu0 %v1203
          %1259 = vmatpush.bf16.msra.mxu0 %v1200
          %1260 = vmatmul.bf16.gmra.mxu0 %v1224
          %v1261 = vpop.f32.mrf.mxu0
          %v1262 = vadd.f32 0.0, %v1261
          %v1263 = vpop.f32.mrf.mxu0
          %1264 = vdwg.mxu0
          %v1265 = vadd.f32 %v1154, %v1236
          %v1266 = vxor.u32 %v1265, 2147483648
          %v1267 = vmul.f32 %v1266, 1.442695
          %v1268 = vpow.pop %v1267
          %v1269 = vadd.f32 %v1268, 1.0
          %v1270 = vrcp.pop %v1269
          %v1271 = vmul.f32 %v1269, %v1270
          %v1272 = vsub.f32 1.0, %v1271
          %v1273 = vmul.f32 %v1270, %v1272
          %v1274 = vadd.f32 %v1270, %v1273
          %vm1275 = vweird.f32 %v1269
          %vm1276 = vweird.f32 %v1270
          %vm1277 = vmor %vm1275, %vm1276
          %v1278 = vsel %vm1277, %v1270, %v1274
          %v1279 = vand.u32 2147483647, %v1269
          %vm1280 = vcmp.eq.f32.partialorder %v1279, 8.507059e+37
          %v1281 = vand.u32 %v1269, 2147483648
          %v1282 = vor.u32 1.1754944e-38, %v1281
          %v1283 = vsel %vm1280, %v1282, %v1278
          %v1284 = vmul.f32 1.0, %v1283
          %v1285 = vadd.f32 %v1155, %v1249
          %v1286 = vxor.u32 %v1285, 2147483648
          %v1287 = vmul.f32 %v1286, 1.442695
          %v1288 = vpow.pop %v1287
          %v1289 = vadd.f32 %v1288, 1.0
          %v1290 = vrcp.pop %v1289
          %v1291 = vmul.f32 %v1289, %v1290
          %v1292 = vsub.f32 1.0, %v1291
          %v1293 = vmul.f32 %v1290, %v1292
          %v1294 = vadd.f32 %v1290, %v1293
          %vm1295 = vweird.f32 %v1289
          %vm1296 = vweird.f32 %v1290
          %vm1297 = vmor %vm1295, %vm1296
          %v1298 = vsel %vm1297, %v1290, %v1294
          %v1299 = vand.u32 2147483647, %v1289
          %vm1300 = vcmp.eq.f32.partialorder %v1299, 8.507059e+37
          %v1301 = vand.u32 %v1289, 2147483648
          %v1302 = vor.u32 1.1754944e-38, %v1301
          %v1303 = vsel %vm1300, %v1302, %v1298
          %v1304 = vmul.f32 1.0, %v1303
          %v1306 = vperm.slane %v1147, 0
          %v1308 = vadd.f32 %v1262, %v1306
          %v1309 = vmul.f32 %v1284, %v1308
          %v1310 = vadd.f32 %v1156, %v1309
          %v1311 = vtanh.pop %v1310
          %v1312 = vsub.f32 1.0, %v1304
          %v1313 = vmul.f32 %v1312, %v1311
          %v1314 = vmul.f32 %v1304, %v1148
          %v1315 = vadd.f32 %v1313, %v1314
          %s1316 = sadd.s32 %s1130, 8
          %s1317 = sshra.s32 %s1316, 3
          %s1318 = sand.u32 %s1316, 7
          %s1319 = smul.u32 %s1317, 3
          %s1320 = smul.addr %s1319, 8
          %s1321 = scalar_lea.vmem [#allocation3], %s1320
          %v1322 = vld [vmem:[%s1321] sm:$0xff]
          %v1323 = vld [vmem:[%s1321 + $0x8] sm:$0xff]
          %v1324 = vld [vmem:[%s1321 + $0x10] sm:$0xff]
          %v1325 = vpack.c.bf16 %v1315, %v1315
          %v1327 = vsel %vm1222, %v1325, 0
          %1329 = vmatpush.bf16.msra.mxu0 0
          %1330 = vmatpush.bf16.msra.mxu0 0
          %1331 = vmatpush.bf16.msra.mxu0 0
          %1332 = vmatpush.bf16.msra.mxu0 0
          %1333 = vmatpush.bf16.msra.mxu0 %v1207
          %1334 = vmatpush.bf16.msra.mxu0 %v1204
          %1335 = vmatpush.bf16.msra.mxu0 %v1201
          %1336 = vmatpush.bf16.msra.mxu0 %v1198
          %1337 = vmatmul.bf16.gmra.mxu0 %v1327
          %v1338 = vpop.f32.mrf.mxu0
          %v1339 = vadd.f32 0.0, %v1338
          %v1340 = vpop.f32.mrf.mxu0
          %1341 = vdwg.mxu0
          %1342 = vmatpush.bf16.msra.mxu0 0
          %1343 = vmatpush.bf16.msra.mxu0 0
          %1344 = vmatpush.bf16.msra.mxu0 0
          %1345 = vmatpush.bf16.msra.mxu0 0
          %1346 = vmatpush.bf16.msra.mxu0 %v1208
          %1347 = vmatpush.bf16.msra.mxu0 %v1205
          %1348 = vmatpush.bf16.msra.mxu0 %v1202
          %1349 = vmatpush.bf16.msra.mxu0 %v1199
          %1350 = vmatmul.bf16.gmra.mxu0 %v1327
          %v1351 = vpop.f32.mrf.mxu0
          %v1352 = vadd.f32 0.0, %v1351
          %v1353 = vpop.f32.mrf.mxu0
          %1354 = vdwg.mxu0
          %1355 = vmatpush.bf16.msra.mxu0 0
          %1356 = vmatpush.bf16.msra.mxu0 0
          %1357 = vmatpush.bf16.msra.mxu0 0
          %1358 = vmatpush.bf16.msra.mxu0 0
          %1359 = vmatpush.bf16.msra.mxu0 %v1209
          %1360 = vmatpush.bf16.msra.mxu0 %v1206
          %1361 = vmatpush.bf16.msra.mxu0 %v1203
          %1362 = vmatpush.bf16.msra.mxu0 %v1200
          %1363 = vmatmul.bf16.gmra.mxu0 %v1327
          %v1364 = vpop.f32.mrf.mxu0
          %v1365 = vadd.f32 0.0, %v1364
          %v1366 = vpop.f32.mrf.mxu0
          %1367 = vdwg.mxu0
          %v1368 = vadd.f32 %v1322, %v1339
          %v1369 = vxor.u32 %v1368, 2147483648
          %v1370 = vmul.f32 %v1369, 1.442695
          %v1371 = vpow.pop %v1370
          %v1372 = vadd.f32 %v1371, 1.0
          %v1373 = vrcp.pop %v1372
          %v1374 = vmul.f32 %v1372, %v1373
          %v1375 = vsub.f32 1.0, %v1374
          %v1376 = vmul.f32 %v1373, %v1375
          %v1377 = vadd.f32 %v1373, %v1376
          %vm1378 = vweird.f32 %v1372
          %vm1379 = vweird.f32 %v1373
          %vm1380 = vmor %vm1378, %vm1379
          %v1381 = vsel %vm1380, %v1373, %v1377
          %v1382 = vand.u32 2147483647, %v1372
          %vm1383 = vcmp.eq.f32.partialorder %v1382, 8.507059e+37
          %v1384 = vand.u32 %v1372, 2147483648
          %v1385 = vor.u32 1.1754944e-38, %v1384
          %v1386 = vsel %vm1383, %v1385, %v1381
          %v1387 = vmul.f32 1.0, %v1386
          %v1388 = vadd.f32 %v1323, %v1352
          %v1389 = vxor.u32 %v1388, 2147483648
          %v1390 = vmul.f32 %v1389, 1.442695
          %v1391 = vpow.pop %v1390
          %v1392 = vadd.f32 %v1391, 1.0
          %v1393 = vrcp.pop %v1392
          %v1394 = vmul.f32 %v1392, %v1393
          %v1395 = vsub.f32 1.0, %v1394
          %v1396 = vmul.f32 %v1393, %v1395
          %v1397 = vadd.f32 %v1393, %v1396
          %vm1398 = vweird.f32 %v1392
          %vm1399 = vweird.f32 %v1393
          %vm1400 = vmor %vm1398, %vm1399
          %v1401 = vsel %vm1400, %v1393, %v1397
          %v1402 = vand.u32 2147483647, %v1392
          %vm1403 = vcmp.eq.f32.partialorder %v1402, 8.507059e+37
          %v1404 = vand.u32 %v1392, 2147483648
          %v1405 = vor.u32 1.1754944e-38, %v1404
          %v1406 = vsel %vm1403, %v1405, %v1401
          %v1407 = vmul.f32 1.0, %v1406
          %v1408 = vadd.f32 %v1365, %v1306
          %v1409 = vmul.f32 %v1387, %v1408
          %v1410 = vadd.f32 %v1324, %v1409
          %v1411 = vtanh.pop %v1410
          %v1412 = vsub.f32 1.0, %v1407
          %v1413 = vmul.f32 %v1412, %v1411
          %v1414 = vmul.f32 %v1407, %v1315
          %v1415 = vadd.f32 %v1413, %v1414
          %s1416 = sadd.s32 %s1130, 16
          %s1417 = sshra.s32 %s1416, 3
          %s1418 = sand.u32 %s1416, 7
          %s1419 = smul.u32 %s1417, 3
          %s1420 = smul.addr %s1419, 8
          %s1421 = scalar_lea.vmem [#allocation3], %s1420
          %v1422 = vld [vmem:[%s1421] sm:$0xff]
          %v1423 = vld [vmem:[%s1421 + $0x8] sm:$0xff]
          %v1424 = vld [vmem:[%s1421 + $0x10] sm:$0xff]
          %v1425 = vpack.c.bf16 %v1415, %v1415
          %v1427 = vsel %vm1222, %v1425, 0
          %1429 = vmatpush.bf16.msra.mxu0 0
          %1430 = vmatpush.bf16.msra.mxu0 0
          %1431 = vmatpush.bf16.msra.mxu0 0
          %1432 = vmatpush.bf16.msra.mxu0 0
          %1433 = vmatpush.bf16.msra.mxu0 %v1207
          %1434 = vmatpush.bf16.msra.mxu0 %v1204
          %1435 = vmatpush.bf16.msra.mxu0 %v1201
          %1436 = vmatpush.bf16.msra.mxu0 %v1198
          %1437 = vmatmul.bf16.gmra.mxu0 %v1427
          %v1438 = vpop.f32.mrf.mxu0
          %v1439 = vadd.f32 0.0, %v1438
          %v1440 = vpop.f32.mrf.mxu0
          %1441 = vdwg.mxu0
          %1442 = vmatpush.bf16.msra.mxu0 0
          %1443 = vmatpush.bf16.msra.mxu0 0
          %1444 = vmatpush.bf16.msra.mxu0 0
          %1445 = vmatpush.bf16.msra.mxu0 0
          %1446 = vmatpush.bf16.msra.mxu0 %v1208
          %1447 = vmatpush.bf16.msra.mxu0 %v1205
          %1448 = vmatpush.bf16.msra.mxu0 %v1202
          %1449 = vmatpush.bf16.msra.mxu0 %v1199
          %1450 = vmatmul.bf16.gmra.mxu0 %v1427
          %v1451 = vpop.f32.mrf.mxu0
          %v1452 = vadd.f32 0.0, %v1451
          %v1453 = vpop.f32.mrf.mxu0
          %1454 = vdwg.mxu0
          %1455 = vmatpush.bf16.msra.mxu0 0
          %1456 = vmatpush.bf16.msra.mxu0 0
          %1457 = vmatpush.bf16.msra.mxu0 0
          %1458 = vmatpush.bf16.msra.mxu0 0
          %1459 = vmatpush.bf16.msra.mxu0 %v1209
          %1460 = vmatpush.bf16.msra.mxu0 %v1206
          %1461 = vmatpush.bf16.msra.mxu0 %v1203
          %1462 = vmatpush.bf16.msra.mxu0 %v1200
          %1463 = vmatmul.bf16.gmra.mxu0 %v1427
          %v1464 = vpop.f32.mrf.mxu0
          %v1465 = vadd.f32 0.0, %v1464
          %v1466 = vpop.f32.mrf.mxu0
          %1467 = vdwg.mxu0
          %v1468 = vadd.f32 %v1422, %v1439
          %v1469 = vxor.u32 %v1468, 2147483648
          %v1470 = vmul.f32 %v1469, 1.442695
          %v1471 = vpow.pop %v1470
          %v1472 = vadd.f32 %v1471, 1.0
          %v1473 = vrcp.pop %v1472
          %v1474 = vmul.f32 %v1472, %v1473
          %v1475 = vsub.f32 1.0, %v1474
          %v1476 = vmul.f32 %v1473, %v1475
          %v1477 = vadd.f32 %v1473, %v1476
          %vm1478 = vweird.f32 %v1472
          %vm1479 = vweird.f32 %v1473
          %vm1480 = vmor %vm1478, %vm1479
          %v1481 = vsel %vm1480, %v1473, %v1477
          %v1482 = vand.u32 2147483647, %v1472
          %vm1483 = vcmp.eq.f32.partialorder %v1482, 8.507059e+37
          %v1484 = vand.u32 %v1472, 2147483648
          %v1485 = vor.u32 1.1754944e-38, %v1484
          %v1486 = vsel %vm1483, %v1485, %v1481
          %v1487 = vmul.f32 1.0, %v1486
          %v1488 = vadd.f32 %v1423, %v1452
          %v1489 = vxor.u32 %v1488, 2147483648
          %v1490 = vmul.f32 %v1489, 1.442695
          %v1491 = vpow.pop %v1490
          %v1492 = vadd.f32 %v1491, 1.0
          %v1493 = vrcp.pop %v1492
          %v1494 = vmul.f32 %v1492, %v1493
          %v1495 = vsub.f32 1.0, %v1494
          %v1496 = vmul.f32 %v1493, %v1495
          %v1497 = vadd.f32 %v1493, %v1496
          %vm1498 = vweird.f32 %v1492
          %vm1499 = vweird.f32 %v1493
          %vm1500 = vmor %vm1498, %vm1499
          %v1501 = vsel %vm1500, %v1493, %v1497
          %v1502 = vand.u32 2147483647, %v1492
          %vm1503 = vcmp.eq.f32.partialorder %v1502, 8.507059e+37
          %v1504 = vand.u32 %v1492, 2147483648
          %v1505 = vor.u32 1.1754944e-38, %v1504
          %v1506 = vsel %vm1503, %v1505, %v1501
          %v1507 = vmul.f32 1.0, %v1506
          %v1508 = vadd.f32 %v1465, %v1306
          %v1509 = vmul.f32 %v1487, %v1508
          %v1510 = vadd.f32 %v1424, %v1509
          %v1511 = vtanh.pop %v1510
          %v1512 = vsub.f32 1.0, %v1507
          %v1513 = vmul.f32 %v1512, %v1511
          %v1514 = vmul.f32 %v1507, %v1415
          %v1515 = vadd.f32 %v1513, %v1514
          %s1516 = sadd.s32 %s1130, 24
          %s1517 = sshra.s32 %s1516, 3
          %s1518 = sand.u32 %s1516, 7
          %s1519 = smul.u32 %s1517, 3
          %s1520 = smul.addr %s1519, 8
          %s1521 = scalar_lea.vmem [#allocation3], %s1520
          %v1522 = vld [vmem:[%s1521] sm:$0xff]
          %v1523 = vld [vmem:[%s1521 + $0x8] sm:$0xff]
          %v1524 = vld [vmem:[%s1521 + $0x10] sm:$0xff]
          %v1525 = vpack.c.bf16 %v1515, %v1515
          %v1527 = vsel %vm1222, %v1525, 0
          %1529 = vmatpush.bf16.msra.mxu0 0
          %1530 = vmatpush.bf16.msra.mxu0 0
          %1531 = vmatpush.bf16.msra.mxu0 0
          %1532 = vmatpush.bf16.msra.mxu0 0
          %1533 = vmatpush.bf16.msra.mxu0 %v1207
          %1534 = vmatpush.bf16.msra.mxu0 %v1204
          %1535 = vmatpush.bf16.msra.mxu0 %v1201
          %1536 = vmatpush.bf16.msra.mxu0 %v1198
          %1537 = vmatmul.bf16.gmra.mxu0 %v1527
          %v1538 = vpop.f32.mrf.mxu0
          %v1539 = vadd.f32 0.0, %v1538
          %v1540 = vpop.f32.mrf.mxu0
          %1541 = vdwg.mxu0
          %1542 = vmatpush.bf16.msra.mxu0 0
          %1543 = vmatpush.bf16.msra.mxu0 0
          %1544 = vmatpush.bf16.msra.mxu0 0
          %1545 = vmatpush.bf16.msra.mxu0 0
          %1546 = vmatpush.bf16.msra.mxu0 %v1208
          %1547 = vmatpush.bf16.msra.mxu0 %v1205
          %1548 = vmatpush.bf16.msra.mxu0 %v1202
          %1549 = vmatpush.bf16.msra.mxu0 %v1199
          %1550 = vmatmul.bf16.gmra.mxu0 %v1527
          %v1551 = vpop.f32.mrf.mxu0
          %v1552 = vadd.f32 0.0, %v1551
          %v1553 = vpop.f32.mrf.mxu0
          %1554 = vdwg.mxu0
          %1555 = vmatpush.bf16.msra.mxu0 0
          %1556 = vmatpush.bf16.msra.mxu0 0
          %1557 = vmatpush.bf16.msra.mxu0 0
          %1558 = vmatpush.bf16.msra.mxu0 0
          %1559 = vmatpush.bf16.msra.mxu0 %v1209
          %1560 = vmatpush.bf16.msra.mxu0 %v1206
          %1561 = vmatpush.bf16.msra.mxu0 %v1203
          %1562 = vmatpush.bf16.msra.mxu0 %v1200
          %1563 = vmatmul.bf16.gmra.mxu0 %v1527
          %v1564 = vpop.f32.mrf.mxu0
          %v1565 = vadd.f32 0.0, %v1564
          %v1566 = vpop.f32.mrf.mxu0
          %1567 = vdwg.mxu0
          %v1568 = vadd.f32 %v1522, %v1539
          %v1569 = vxor.u32 %v1568, 2147483648
          %v1570 = vmul.f32 %v1569, 1.442695
          %v1571 = vpow.pop %v1570
          %v1572 = vadd.f32 %v1571, 1.0
          %v1573 = vrcp.pop %v1572
          %v1574 = vmul.f32 %v1572, %v1573
          %v1575 = vsub.f32 1.0, %v1574
          %v1576 = vmul.f32 %v1573, %v1575
          %v1577 = vadd.f32 %v1573, %v1576
          %vm1578 = vweird.f32 %v1572
          %vm1579 = vweird.f32 %v1573
          %vm1580 = vmor %vm1578, %vm1579
          %v1581 = vsel %vm1580, %v1573, %v1577
          %v1582 = vand.u32 2147483647, %v1572
          %vm1583 = vcmp.eq.f32.partialorder %v1582, 8.507059e+37
          %v1584 = vand.u32 %v1572, 2147483648
          %v1585 = vor.u32 1.1754944e-38, %v1584
          %v1586 = vsel %vm1583, %v1585, %v1581
          %v1587 = vmul.f32 1.0, %v1586
          %v1588 = vadd.f32 %v1523, %v1552
          %v1589 = vxor.u32 %v1588, 2147483648
          %v1590 = vmul.f32 %v1589, 1.442695
          %v1591 = vpow.pop %v1590
          %v1592 = vadd.f32 %v1591, 1.0
          %v1593 = vrcp.pop %v1592
          %v1594 = vmul.f32 %v1592, %v1593
          %v1595 = vsub.f32 1.0, %v1594
          %v1596 = vmul.f32 %v1593, %v1595
          %v1597 = vadd.f32 %v1593, %v1596
          %vm1598 = vweird.f32 %v1592
          %vm1599 = vweird.f32 %v1593
          %vm1600 = vmor %vm1598, %vm1599
          %v1601 = vsel %vm1600, %v1593, %v1597
          %v1602 = vand.u32 2147483647, %v1592
          %vm1603 = vcmp.eq.f32.partialorder %v1602, 8.507059e+37
          %v1604 = vand.u32 %v1592, 2147483648
          %v1605 = vor.u32 1.1754944e-38, %v1604
          %v1606 = vsel %vm1603, %v1605, %v1601
          %v1607 = vmul.f32 1.0, %v1606
          %v1608 = vadd.f32 %v1565, %v1306
          %v1609 = vmul.f32 %v1587, %v1608
          %v1610 = vadd.f32 %v1524, %v1609
          %v1611 = vtanh.pop %v1610
          %v1612 = vsub.f32 1.0, %v1607
          %v1613 = vmul.f32 %v1612, %v1611
          %v1614 = vmul.f32 %v1607, %v1515
          %v1615 = vadd.f32 %v1613, %v1614
          %s1616 = sadd.s32 %s1130, 32
          %s1617 = sshra.s32 %s1616, 3
          %s1618 = sand.u32 %s1616, 7
          %s1619 = smul.u32 %s1617, 3
          %s1620 = smul.addr %s1619, 8
          %s1621 = scalar_lea.vmem [#allocation3], %s1620
          %v1622 = vld [vmem:[%s1621] sm:$0xff]
          %v1623 = vld [vmem:[%s1621 + $0x8] sm:$0xff]
          %v1624 = vld [vmem:[%s1621 + $0x10] sm:$0xff]
          %v1625 = vpack.c.bf16 %v1615, %v1615
          %v1627 = vsel %vm1222, %v1625, 0
          %1629 = vmatpush.bf16.msra.mxu0 0
          %1630 = vmatpush.bf16.msra.mxu0 0
          %1631 = vmatpush.bf16.msra.mxu0 0
          %1632 = vmatpush.bf16.msra.mxu0 0
          %1633 = vmatpush.bf16.msra.mxu0 %v1207
          %1634 = vmatpush.bf16.msra.mxu0 %v1204
          %1635 = vmatpush.bf16.msra.mxu0 %v1201
          %1636 = vmatpush.bf16.msra.mxu0 %v1198
          %1637 = vmatmul.bf16.gmra.mxu0 %v1627
          %v1638 = vpop.f32.mrf.mxu0
          %v1639 = vadd.f32 0.0, %v1638
          %v1640 = vpop.f32.mrf.mxu0
          %1641 = vdwg.mxu0
          %1642 = vmatpush.bf16.msra.mxu0 0
          %1643 = vmatpush.bf16.msra.mxu0 0
          %1644 = vmatpush.bf16.msra.mxu0 0
          %1645 = vmatpush.bf16.msra.mxu0 0
          %1646 = vmatpush.bf16.msra.mxu0 %v1208
          %1647 = vmatpush.bf16.msra.mxu0 %v1205
          %1648 = vmatpush.bf16.msra.mxu0 %v1202
          %1649 = vmatpush.bf16.msra.mxu0 %v1199
          %1650 = vmatmul.bf16.gmra.mxu0 %v1627
          %v1651 = vpop.f32.mrf.mxu0
          %v1652 = vadd.f32 0.0, %v1651
          %v1653 = vpop.f32.mrf.mxu0
          %1654 = vdwg.mxu0
          %1655 = vmatpush.bf16.msra.mxu0 0
          %1656 = vmatpush.bf16.msra.mxu0 0
          %1657 = vmatpush.bf16.msra.mxu0 0
          %1658 = vmatpush.bf16.msra.mxu0 0
          %1659 = vmatpush.bf16.msra.mxu0 %v1209
          %1660 = vmatpush.bf16.msra.mxu0 %v1206
          %1661 = vmatpush.bf16.msra.mxu0 %v1203
          %1662 = vmatpush.bf16.msra.mxu0 %v1200
          %1663 = vmatmul.bf16.gmra.mxu0 %v1627
          %v1664 = vpop.f32.mrf.mxu0
          %v1665 = vadd.f32 0.0, %v1664
          %v1666 = vpop.f32.mrf.mxu0
          %1667 = vdwg.mxu0
          %v1668 = vadd.f32 %v1622, %v1639
          %v1669 = vxor.u32 %v1668, 2147483648
          %v1670 = vmul.f32 %v1669, 1.442695
          %v1671 = vpow.pop %v1670
          %v1672 = vadd.f32 %v1671, 1.0
          %v1673 = vrcp.pop %v1672
          %v1674 = vmul.f32 %v1672, %v1673
          %v1675 = vsub.f32 1.0, %v1674
          %v1676 = vmul.f32 %v1673, %v1675
          %v1677 = vadd.f32 %v1673, %v1676
          %vm1678 = vweird.f32 %v1672
          %vm1679 = vweird.f32 %v1673
          %vm1680 = vmor %vm1678, %vm1679
          %v1681 = vsel %vm1680, %v1673, %v1677
          %v1682 = vand.u32 2147483647, %v1672
          %vm1683 = vcmp.eq.f32.partialorder %v1682, 8.507059e+37
          %v1684 = vand.u32 %v1672, 2147483648
          %v1685 = vor.u32 1.1754944e-38, %v1684
          %v1686 = vsel %vm1683, %v1685, %v1681
          %v1687 = vmul.f32 1.0, %v1686
          %v1688 = vadd.f32 %v1623, %v1652
          %v1689 = vxor.u32 %v1688, 2147483648
          %v1690 = vmul.f32 %v1689, 1.442695
          %v1691 = vpow.pop %v1690
          %v1692 = vadd.f32 %v1691, 1.0
          %v1693 = vrcp.pop %v1692
          %v1694 = vmul.f32 %v1692, %v1693
          %v1695 = vsub.f32 1.0, %v1694
          %v1696 = vmul.f32 %v1693, %v1695
          %v1697 = vadd.f32 %v1693, %v1696
          %vm1698 = vweird.f32 %v1692
          %vm1699 = vweird.f32 %v1693
          %vm1700 = vmor %vm1698, %vm1699
          %v1701 = vsel %vm1700, %v1693, %v1697
          %v1702 = vand.u32 2147483647, %v1692
          %vm1703 = vcmp.eq.f32.partialorder %v1702, 8.507059e+37
          %v1704 = vand.u32 %v1692, 2147483648
          %v1705 = vor.u32 1.1754944e-38, %v1704
          %v1706 = vsel %vm1703, %v1705, %v1701
          %v1707 = vmul.f32 1.0, %v1706
          %v1708 = vadd.f32 %v1665, %v1306
          %v1709 = vmul.f32 %v1687, %v1708
          %v1710 = vadd.f32 %v1624, %v1709
          %v1711 = vtanh.pop %v1710
          %v1712 = vsub.f32 1.0, %v1707
          %v1713 = vmul.f32 %v1712, %v1711
          %v1714 = vmul.f32 %v1707, %v1615
          %v1715 = vadd.f32 %v1713, %v1714
          %s1716 = sadd.s32 %s1130, 40
          %s1717 = sshra.s32 %s1716, 3
          %s1718 = sand.u32 %s1716, 7
          %s1719 = smul.u32 %s1717, 3
          %s1720 = smul.addr %s1719, 8
          %s1721 = scalar_lea.vmem [#allocation3], %s1720
          %v1722 = vld [vmem:[%s1721] sm:$0xff]
          %v1723 = vld [vmem:[%s1721 + $0x8] sm:$0xff]
          %v1724 = vld [vmem:[%s1721 + $0x10] sm:$0xff]
          %v1725 = vpack.c.bf16 %v1715, %v1715
          %v1727 = vsel %vm1222, %v1725, 0
          %1729 = vmatpush.bf16.msra.mxu0 0
          %1730 = vmatpush.bf16.msra.mxu0 0
          %1731 = vmatpush.bf16.msra.mxu0 0
          %1732 = vmatpush.bf16.msra.mxu0 0
          %1733 = vmatpush.bf16.msra.mxu0 %v1207
          %1734 = vmatpush.bf16.msra.mxu0 %v1204
          %1735 = vmatpush.bf16.msra.mxu0 %v1201
          %1736 = vmatpush.bf16.msra.mxu0 %v1198
          %1737 = vmatmul.bf16.gmra.mxu0 %v1727
          %v1738 = vpop.f32.mrf.mxu0
          %v1739 = vadd.f32 0.0, %v1738
          %v1740 = vpop.f32.mrf.mxu0
          %1741 = vdwg.mxu0
          %1742 = vmatpush.bf16.msra.mxu0 0
          %1743 = vmatpush.bf16.msra.mxu0 0
          %1744 = vmatpush.bf16.msra.mxu0 0
          %1745 = vmatpush.bf16.msra.mxu0 0
          %1746 = vmatpush.bf16.msra.mxu0 %v1208
          %1747 = vmatpush.bf16.msra.mxu0 %v1205
          %1748 = vmatpush.bf16.msra.mxu0 %v1202
          %1749 = vmatpush.bf16.msra.mxu0 %v1199
          %1750 = vmatmul.bf16.gmra.mxu0 %v1727
          %v1751 = vpop.f32.mrf.mxu0
          %v1752 = vadd.f32 0.0, %v1751
          %v1753 = vpop.f32.mrf.mxu0
          %1754 = vdwg.mxu0
          %1755 = vmatpush.bf16.msra.mxu0 0
          %1756 = vmatpush.bf16.msra.mxu0 0
          %1757 = vmatpush.bf16.msra.mxu0 0
          %1758 = vmatpush.bf16.msra.mxu0 0
          %1759 = vmatpush.bf16.msra.mxu0 %v1209
          %1760 = vmatpush.bf16.msra.mxu0 %v1206
          %1761 = vmatpush.bf16.msra.mxu0 %v1203
          %1762 = vmatpush.bf16.msra.mxu0 %v1200
          %1763 = vmatmul.bf16.gmra.mxu0 %v1727
          %v1764 = vpop.f32.mrf.mxu0
          %v1765 = vadd.f32 0.0, %v1764
          %v1766 = vpop.f32.mrf.mxu0
          %1767 = vdwg.mxu0
          %v1768 = vadd.f32 %v1722, %v1739
          %v1769 = vxor.u32 %v1768, 2147483648
          %v1770 = vmul.f32 %v1769, 1.442695
          %v1771 = vpow.pop %v1770
          %v1772 = vadd.f32 %v1771, 1.0
          %v1773 = vrcp.pop %v1772
          %v1774 = vmul.f32 %v1772, %v1773
          %v1775 = vsub.f32 1.0, %v1774
          %v1776 = vmul.f32 %v1773, %v1775
          %v1777 = vadd.f32 %v1773, %v1776
          %vm1778 = vweird.f32 %v1772
          %vm1779 = vweird.f32 %v1773
          %vm1780 = vmor %vm1778, %vm1779
          %v1781 = vsel %vm1780, %v1773, %v1777
          %v1782 = vand.u32 2147483647, %v1772
          %vm1783 = vcmp.eq.f32.partialorder %v1782, 8.507059e+37
          %v1784 = vand.u32 %v1772, 2147483648
          %v1785 = vor.u32 1.1754944e-38, %v1784
          %v1786 = vsel %vm1783, %v1785, %v1781
          %v1787 = vmul.f32 1.0, %v1786
          %v1788 = vadd.f32 %v1723, %v1752
          %v1789 = vxor.u32 %v1788, 2147483648
          %v1790 = vmul.f32 %v1789, 1.442695
          %v1791 = vpow.pop %v1790
          %v1792 = vadd.f32 %v1791, 1.0
          %v1793 = vrcp.pop %v1792
          %v1794 = vmul.f32 %v1792, %v1793
          %v1795 = vsub.f32 1.0, %v1794
          %v1796 = vmul.f32 %v1793, %v1795
          %v1797 = vadd.f32 %v1793, %v1796
          %vm1798 = vweird.f32 %v1792
          %vm1799 = vweird.f32 %v1793
          %vm1800 = vmor %vm1798, %vm1799
          %v1801 = vsel %vm1800, %v1793, %v1797
          %v1802 = vand.u32 2147483647, %v1792
          %vm1803 = vcmp.eq.f32.partialorder %v1802, 8.507059e+37
          %v1804 = vand.u32 %v1792, 2147483648
          %v1805 = vor.u32 1.1754944e-38, %v1804
          %v1806 = vsel %vm1803, %v1805, %v1801
          %v1807 = vmul.f32 1.0, %v1806
          %v1808 = vadd.f32 %v1765, %v1306
          %v1809 = vmul.f32 %v1787, %v1808
          %v1810 = vadd.f32 %v1724, %v1809
          %v1811 = vtanh.pop %v1810
          %v1812 = vsub.f32 1.0, %v1807
          %v1813 = vmul.f32 %v1812, %v1811
          %v1814 = vmul.f32 %v1807, %v1715
          %v1815 = vadd.f32 %v1813, %v1814
          %s1816 = sadd.s32 %s1130, 48
          %s1817 = sshra.s32 %s1816, 3
          %s1818 = sand.u32 %s1816, 7
          %s1819 = smul.u32 %s1817, 3
          %s1820 = smul.addr %s1819, 8
          %s1821 = scalar_lea.vmem [#allocation3], %s1820
          %v1822 = vld [vmem:[%s1821] sm:$0xff]
          %v1823 = vld [vmem:[%s1821 + $0x8] sm:$0xff]
          %v1824 = vld [vmem:[%s1821 + $0x10] sm:$0xff]
          %v1825 = vpack.c.bf16 %v1815, %v1815
          %v1827 = vsel %vm1222, %v1825, 0
          %1829 = vmatpush.bf16.msra.mxu0 0
          %1830 = vmatpush.bf16.msra.mxu0 0
          %1831 = vmatpush.bf16.msra.mxu0 0
          %1832 = vmatpush.bf16.msra.mxu0 0
          %1833 = vmatpush.bf16.msra.mxu0 %v1207
          %1834 = vmatpush.bf16.msra.mxu0 %v1204
          %1835 = vmatpush.bf16.msra.mxu0 %v1201
          %1836 = vmatpush.bf16.msra.mxu0 %v1198
          %1837 = vmatmul.bf16.gmra.mxu0 %v1827
          %v1838 = vpop.f32.mrf.mxu0
          %v1839 = vadd.f32 0.0, %v1838
          %v1840 = vpop.f32.mrf.mxu0
          %1841 = vdwg.mxu0
          %1842 = vmatpush.bf16.msra.mxu0 0
          %1843 = vmatpush.bf16.msra.mxu0 0
          %1844 = vmatpush.bf16.msra.mxu0 0
          %1845 = vmatpush.bf16.msra.mxu0 0
          %1846 = vmatpush.bf16.msra.mxu0 %v1208
          %1847 = vmatpush.bf16.msra.mxu0 %v1205
          %1848 = vmatpush.bf16.msra.mxu0 %v1202
          %1849 = vmatpush.bf16.msra.mxu0 %v1199
          %1850 = vmatmul.bf16.gmra.mxu0 %v1827
          %v1851 = vpop.f32.mrf.mxu0
          %v1852 = vadd.f32 0.0, %v1851
          %v1853 = vpop.f32.mrf.mxu0
          %1854 = vdwg.mxu0
          %1855 = vmatpush.bf16.msra.mxu0 0
          %1856 = vmatpush.bf16.msra.mxu0 0
          %1857 = vmatpush.bf16.msra.mxu0 0
          %1858 = vmatpush.bf16.msra.mxu0 0
          %1859 = vmatpush.bf16.msra.mxu0 %v1209
          %1860 = vmatpush.bf16.msra.mxu0 %v1206
          %1861 = vmatpush.bf16.msra.mxu0 %v1203
          %1862 = vmatpush.bf16.msra.mxu0 %v1200
          %1863 = vmatmul.bf16.gmra.mxu0 %v1827
          %v1864 = vpop.f32.mrf.mxu0
          %v1865 = vadd.f32 0.0, %v1864
          %v1866 = vpop.f32.mrf.mxu0
          %1867 = vdwg.mxu0
          %v1868 = vadd.f32 %v1822, %v1839
          %v1869 = vxor.u32 %v1868, 2147483648
          %v1870 = vmul.f32 %v1869, 1.442695
          %v1871 = vpow.pop %v1870
          %v1872 = vadd.f32 %v1871, 1.0
          %v1873 = vrcp.pop %v1872
          %v1874 = vmul.f32 %v1872, %v1873
          %v1875 = vsub.f32 1.0, %v1874
          %v1876 = vmul.f32 %v1873, %v1875
          %v1877 = vadd.f32 %v1873, %v1876
          %vm1878 = vweird.f32 %v1872
          %vm1879 = vweird.f32 %v1873
          %vm1880 = vmor %vm1878, %vm1879
          %v1881 = vsel %vm1880, %v1873, %v1877
          %v1882 = vand.u32 2147483647, %v1872
          %vm1883 = vcmp.eq.f32.partialorder %v1882, 8.507059e+37
          %v1884 = vand.u32 %v1872, 2147483648
          %v1885 = vor.u32 1.1754944e-38, %v1884
          %v1886 = vsel %vm1883, %v1885, %v1881
          %v1887 = vmul.f32 1.0, %v1886
          %v1888 = vadd.f32 %v1823, %v1852
          %v1889 = vxor.u32 %v1888, 2147483648
          %v1890 = vmul.f32 %v1889, 1.442695
          %v1891 = vpow.pop %v1890
          %v1892 = vadd.f32 %v1891, 1.0
          %v1893 = vrcp.pop %v1892
          %v1894 = vmul.f32 %v1892, %v1893
          %v1895 = vsub.f32 1.0, %v1894
          %v1896 = vmul.f32 %v1893, %v1895
          %v1897 = vadd.f32 %v1893, %v1896
          %vm1898 = vweird.f32 %v1892
          %vm1899 = vweird.f32 %v1893
          %vm1900 = vmor %vm1898, %vm1899
          %v1901 = vsel %vm1900, %v1893, %v1897
          %v1902 = vand.u32 2147483647, %v1892
          %vm1903 = vcmp.eq.f32.partialorder %v1902, 8.507059e+37
          %v1904 = vand.u32 %v1892, 2147483648
          %v1905 = vor.u32 1.1754944e-38, %v1904
          %v1906 = vsel %vm1903, %v1905, %v1901
          %v1907 = vmul.f32 1.0, %v1906
          %v1908 = vadd.f32 %v1865, %v1306
          %v1909 = vmul.f32 %v1887, %v1908
          %v1910 = vadd.f32 %v1824, %v1909
          %v1911 = vtanh.pop %v1910
          %v1912 = vsub.f32 1.0, %v1907
          %v1913 = vmul.f32 %v1912, %v1911
          %v1914 = vmul.f32 %v1907, %v1815
          %v1915 = vadd.f32 %v1913, %v1914
          %s1916 = sadd.s32 %s1130, 56
          %s1917 = sshra.s32 %s1916, 3
          %s1918 = sand.u32 %s1916, 7
          %s1919 = smul.u32 %s1917, 3
          %s1920 = smul.addr %s1919, 8
          %s1921 = scalar_lea.vmem [#allocation3], %s1920
          %v1922 = vld [vmem:[%s1921] sm:$0xff]
          %v1923 = vld [vmem:[%s1921 + $0x8] sm:$0xff]
          %v1924 = vld [vmem:[%s1921 + $0x10] sm:$0xff]
          %v1925 = vpack.c.bf16 %v1915, %v1915
          %v1927 = vsel %vm1222, %v1925, 0
          %1929 = vmatpush.bf16.msra.mxu0 0
          %1930 = vmatpush.bf16.msra.mxu0 0
          %1931 = vmatpush.bf16.msra.mxu0 0
          %1932 = vmatpush.bf16.msra.mxu0 0
          %1933 = vmatpush.bf16.msra.mxu0 %v1207
          %1934 = vmatpush.bf16.msra.mxu0 %v1204
          %1935 = vmatpush.bf16.msra.mxu0 %v1201
          %1936 = vmatpush.bf16.msra.mxu0 %v1198
          %1937 = vmatmul.bf16.gmra.mxu0 %v1927
          %v1938 = vpop.f32.mrf.mxu0
          %v1939 = vadd.f32 0.0, %v1938
          %v1940 = vpop.f32.mrf.mxu0
          %1941 = vdwg.mxu0
          %1942 = vmatpush.bf16.msra.mxu0 0
          %1943 = vmatpush.bf16.msra.mxu0 0
          %1944 = vmatpush.bf16.msra.mxu0 0
          %1945 = vmatpush.bf16.msra.mxu0 0
          %1946 = vmatpush.bf16.msra.mxu0 %v1208
          %1947 = vmatpush.bf16.msra.mxu0 %v1205
          %1948 = vmatpush.bf16.msra.mxu0 %v1202
          %1949 = vmatpush.bf16.msra.mxu0 %v1199
          %1950 = vmatmul.bf16.gmra.mxu0 %v1927
          %v1951 = vpop.f32.mrf.mxu0
          %v1952 = vadd.f32 0.0, %v1951
          %v1953 = vpop.f32.mrf.mxu0
          %1954 = vdwg.mxu0
          %1955 = vmatpush.bf16.msra.mxu0 0
          %1956 = vmatpush.bf16.msra.mxu0 0
          %1957 = vmatpush.bf16.msra.mxu0 0
          %1958 = vmatpush.bf16.msra.mxu0 0
          %1959 = vmatpush.bf16.msra.mxu0 %v1209
          %1960 = vmatpush.bf16.msra.mxu0 %v1206
          %1961 = vmatpush.bf16.msra.mxu0 %v1203
          %1962 = vmatpush.bf16.msra.mxu0 %v1200
          %1963 = vmatmul.bf16.gmra.mxu0 %v1927
          %v1964 = vpop.f32.mrf.mxu0
          %v1965 = vadd.f32 0.0, %v1964
          %v1966 = vpop.f32.mrf.mxu0
          %1967 = vdwg.mxu0
          %v1968 = vadd.f32 %v1922, %v1939
          %v1969 = vxor.u32 %v1968, 2147483648
          %v1970 = vmul.f32 %v1969, 1.442695
          %v1971 = vpow.pop %v1970
          %v1972 = vadd.f32 %v1971, 1.0
          %v1973 = vrcp.pop %v1972
          %v1974 = vmul.f32 %v1972, %v1973
          %v1975 = vsub.f32 1.0, %v1974
          %v1976 = vmul.f32 %v1973, %v1975
          %v1977 = vadd.f32 %v1973, %v1976
          %vm1978 = vweird.f32 %v1972
          %vm1979 = vweird.f32 %v1973
          %vm1980 = vmor %vm1978, %vm1979
          %v1981 = vsel %vm1980, %v1973, %v1977
          %v1982 = vand.u32 2147483647, %v1972
          %vm1983 = vcmp.eq.f32.partialorder %v1982, 8.507059e+37
          %v1984 = vand.u32 %v1972, 2147483648
          %v1985 = vor.u32 1.1754944e-38, %v1984
          %v1986 = vsel %vm1983, %v1985, %v1981
          %v1987 = vmul.f32 1.0, %v1986
          %v1988 = vadd.f32 %v1923, %v1952
          %v1989 = vxor.u32 %v1988, 2147483648
          %v1990 = vmul.f32 %v1989, 1.442695
          %v1991 = vpow.pop %v1990
          %v1992 = vadd.f32 %v1991, 1.0
          %v1993 = vrcp.pop %v1992
          %v1994 = vmul.f32 %v1992, %v1993
          %v1995 = vsub.f32 1.0, %v1994
          %v1996 = vmul.f32 %v1993, %v1995
          %v1997 = vadd.f32 %v1993, %v1996
          %vm1998 = vweird.f32 %v1992
          %vm1999 = vweird.f32 %v1993
          %vm2000 = vmor %vm1998, %vm1999
          %v2001 = vsel %vm2000, %v1993, %v1997
          %v2002 = vand.u32 2147483647, %v1992
          %vm2003 = vcmp.eq.f32.partialorder %v2002, 8.507059e+37
          %v2004 = vand.u32 %v1992, 2147483648
          %v2005 = vor.u32 1.1754944e-38, %v2004
          %v2006 = vsel %vm2003, %v2005, %v2001
          %v2007 = vmul.f32 1.0, %v2006
          %v2008 = vadd.f32 %v1965, %v1306
          %v2009 = vmul.f32 %v1987, %v2008
          %v2010 = vadd.f32 %v1924, %v2009
          %v2011 = vtanh.pop %v2010
          %v2012 = vsub.f32 1.0, %v2007
          %v2013 = vmul.f32 %v2012, %v2011
          %v2014 = vmul.f32 %v2007, %v1915
          %v2015 = vadd.f32 %v2013, %v2014
          %2016 = vst.msk [vmem:[#allocation2] sm:$0xff] %vm1222, %v2015
        $region92: #{tpu_custom_call.1} parent=55 // pred_fallthru
          _
        %p2017 = scmp.eq.s32.totalorder %s34, 1
        // Predicated region
        $region93: #{tpu_custom_call.1} parent=55 // pred_check
          %p2018 = pneg %p2017
        $region94: #{tpu_custom_call.1} parent=55 // pred_check_branch
          %2020 = sbr.rel (%p2018) target = $region96
        $region95: #{tpu_custom_call.1} parent=55 // pred_region
          %v2021 = vld [vmem:[#allocation2] sm:$0xff]
          %v2022 = vpack.c.bf16 %v2021, %v2021
          %v2023 = vld [vmem:[#allocation13] sm:$0xf]
          %v2024 = vld [vmem:[#allocation13 + $0x4] sm:$0xf]
          %v2025 = vld [vmem:[#allocation13 + $0x8] sm:$0xf]
          %v2026 = vld [vmem:[#allocation13 + $0xc] sm:$0xf]
          %v2027 = vld [vmem:[#allocation13 + $0x10] sm:$0xf]
          %v2028 = vld [vmem:[#allocation13 + $0x14] sm:$0xf]
          %v2029 = vld [vmem:[#allocation13 + $0x18] sm:$0xf]
          %v2030 = vld [vmem:[#allocation13 + $0x1c] sm:$0xf]
          %v2031 = vld [vmem:[%s8] sm:$0x1]
          %v2033 = vperm.slane %v2031, 0
          %v2043 = vunpack.c.l.b16 %v2023
          %v2044 = vunpack.c.l.b16 %v2024
          %v2045 = vunpack.c.l.b16 %v2025
          %v2046 = vunpack.c.l.b16 %v2026
          %v2047 = vunpack.c.l.b16 %v2027
          %v2048 = vunpack.c.l.b16 %v2028
          %v2049 = vunpack.c.l.b16 %v2029
          %v2050 = vunpack.c.l.b16 %v2030
          %v2051 = vpack.c.b16 %v2044, %v2043
          %v2052 = vpack.c.b16 %v2046, %v2045
          %v2053 = vpack.c.b16 %v2048, %v2047
          %v2054 = vpack.c.b16 %v2050, %v2049
          %vm2059 = vcmask 523264
          %v2061 = vsel %vm2059, %v2022, 0
          %2063 = vmatpush.bf16.msra.mxu0 0
          %2064 = vmatpush.bf16.msra.mxu0 0
          %2065 = vmatpush.bf16.msra.mxu0 0
          %2066 = vmatpush.bf16.msra.mxu0 0
          %2067 = vmatpush.bf16.msra.mxu0 %v2054
          %2068 = vmatpush.bf16.msra.mxu0 %v2053
          %2069 = vmatpush.bf16.msra.mxu0 %v2052
          %2070 = vmatpush.bf16.msra.mxu0 %v2051
          %2071 = vmatmul.bf16.gmra.mxu0 %v2061
          %v2072 = vpop.f32.mrf.mxu0
          %v2073 = vadd.f32 %v2033, %v2072
          %v2074 = vpop.f32.mrf.mxu0
          %2075 = vdwg.mxu0
          %2076 = vst [vmem:[#allocation15] sm:$0xff] %v2073
        $region96: #{tpu_custom_call.1} parent=55 // pred_fallthru
          _
        // Predicated region
        $region97: #{tpu_custom_call.1} parent=55 // pred_check
          %p2077 = pneg %p270
        $region98: #{tpu_custom_call.1} parent=55 // pred_check_branch
          %2079 = sbr.rel (%p2077) target = $region100
        $region99: #{tpu_custom_call.1} parent=55 // pred_region
          %2081 = vsyncadd [#allocation6], 0
          %s2082 = smul.addr %s33, 8
          %s2083 = scalar_lea.hbm %s9, %s2082
          %s2085 = sshll.u32 [#allocation15], 4
          %s2086 = int_to_ptr.vmem [resolvable:$true] %s2085
          %s2087 = sshll.u32 %s2083, 4
          %s2088 = int_to_ptr.hbm [resolvable:$true] %s2087
          %2090 = dma.vmem_to_hbm [thread:$0]  %s2086, 128, %s2088, [#allocation6]
        $region100: #{tpu_custom_call.1} parent=55 // pred_fallthru
          _
        // Predicated region
        $region101: #{tpu_custom_call.1} parent=55 // pred_check
          %p2091 = pneg %p270
        $region102: #{tpu_custom_call.1} parent=55 // pred_check_branch
          %2093 = sbr.rel (%p2091) target = $region104
        $region103: #{tpu_custom_call.1} parent=55 // pred_region
          %2095 = dma.done [#allocation6], 128
        $region104: #{tpu_custom_call.1} parent=55 // pred_fallthru
          _
      $region56: #{tpu_custom_call.1} parent=5 // pred_fallthru
        _
      %p2096 = scmp.le.s32.totalorder 2, %s24
      // Predicated region
      $region105: #{tpu_custom_call.1} parent=5 // pred_check
        %p2097 = pneg %p2096
      $region106: #{tpu_custom_call.1} parent=5 // pred_check_branch
        %2099 = sbr.rel (%p2097) target = $region108
      $region107: #{tpu_custom_call.1} parent=5 // pred_region
        %s2100 = ssub.s32 %s24, 2
      $region108: #{tpu_custom_call.1} parent=5 // pred_fallthru
        _
    $region6: #{tpu_custom_call.1} parent=1 // loop_footer
      %s28 = sadd.s32 1, %s24
    $region7: #{tpu_custom_call.1} parent=1 // loop_footer_branch
      %23 = sbr.rel target = $region3
    $region8: #{tpu_custom_call.1} parent=1 // loop_exit
      _
    %2101 = vsyncpa [#allocation5], 1
    %s2102 = scalar_lea.sflag [#allocation5], 1
    %2103 = vsyncpa %s2102, 1
    %2104 = vsyncpa [#allocation8], 1
    %s2105 = scalar_lea.sflag [#allocation8], 1
    %2106 = vsyncpa %s2105, 1
    %2107 = vsyncpa [#allocation11], 1
    %2108 = vsyncpa [#allocation14], 1
    %2109 = vsyncpa [#allocation6], 1
    %s2110 = scalar_lea.sflag [#allocation6], 1
    %2111 = vsyncpa %s2110, 1

</llo_original>
